<compile_context>
chip_gen: v7x
topology: tpu7x:2x2x1
jax: 0.10.0
libtpu: 0.0.40
codegen_flags: <defaults>
</compile_context>

<pallas_src>
import functools

import jax
import jax.numpy as jnp
import numpy as np
from jax.experimental import pallas as pl
from jax.experimental.pallas import tpu as pltpu

# ----------------------------- problem sizes --------------------------------
B, S, D, H, L, E = 2, 8, 32, 4, 2, 16   # batch, seq, width, heads, layers, out
DH = D // H
EPS = 1e-5
NEG_INF = -1e30
assert D % H == 0


def _layer_norm(v, w, b):
    mu = jnp.mean(v, axis=-1, keepdims=True)
    var = jnp.mean((v - mu) ** 2, axis=-1, keepdims=True)
    return (v - mu) * jax.lax.rsqrt(var + EPS) * w + b


# ------------------------------- fused kernel --------------------------------
def text_encoder_kernel(
        # inputs
        x0_hbm,                                   # (B*S, D) f32, HBM (pl.ANY)
        onehot_ref,                               # (B, B*S) f32   EOT selector
        ln1w_ref, ln1b_ref,                       # (1, D) per layer
        wq_ref, wk_ref, wv_ref,                   # (D, DH) per (layer, head) bf16
        bq_ref, bk_ref, bv_ref,                   # (1, DH) per (layer, head)
        wo_ref,                                   # (DH, D) per (layer, head) bf16
        bo_ref,                                   # (1, D) per layer
        ln2w_ref, ln2b_ref,                       # (1, D) per layer
        w1_ref, b1_ref, w2_ref, b2_ref,           # MLP per layer (w* bf16)
        lnfw_ref, lnfb_ref, proj_ref,             # (1,D),(1,D),(D,E)
        # output
        out_ref,                                  # (B, E) f32
        # scratch
        x_scr, hln_scr, x0_sem,
        *, batch, seq):
    layer = pl.program_id(0)
    head = pl.program_id(1)
    n_layers = pl.num_programs(0)
    n_heads = pl.num_programs(1)
    dh = wq_ref.shape[-1]

    # ---- very first step: DMA prompts+pos into the resident x scratch ----
    @pl.when((layer == 0) & (head == 0))
    def _load_x0():
        cp = pltpu.make_async_copy(x0_hbm, x_scr, x0_sem)
        cp.start()
        cp.wait()

    # ---- per layer: cache ln_1(x) once, reused by every head ----
    @pl.when(head == 0)
    def _ln1():
        hln_scr[...] = _layer_norm(x_scr[...], ln1w_ref[...], ln1b_ref[...])

    hb = hln_scr[...].astype(jnp.bfloat16)                      # (B*S, D)

    # ---- one attention head (scale already folded into wq / bq) ----
    q = jnp.dot(hb, wq_ref[...], preferred_element_type=jnp.float32) + bq_ref[...]
    k = jnp.dot(hb, wk_ref[...], preferred_element_type=jnp.float32) + bk_ref[...]
    v = jnp.dot(hb, wv_ref[...], preferred_element_type=jnp.float32) + bv_ref[...]
    q3 = q.reshape(batch, seq, dh)                              # leading split: free
    k3 = k.reshape(batch, seq, dh)
    v3 = v.reshape(batch, seq, dh)

    qi = jax.lax.broadcasted_iota(jnp.int32, (seq, seq), 0)
    kj = jax.lax.broadcasted_iota(jnp.int32, (seq, seq), 1)
    mask = jnp.where(kj <= qi, 0.0, NEG_INF).astype(jnp.float32)

    s = jnp.einsum('bqd,bkd->bqk', q3.astype(jnp.bfloat16), k3.astype(jnp.bfloat16),
                   preferred_element_type=jnp.float32) + mask[None, :, :]
    m = jnp.max(s, axis=-1, keepdims=True)
    p = jnp.exp(s - m)
    p = p / jnp.sum(p, axis=-1, keepdims=True)                  # exact (f32)
    ctx = jnp.einsum('bqk,bkd->bqd', p.astype(jnp.bfloat16), v3.astype(jnp.bfloat16),
                     preferred_element_type=jnp.float32)        # (B, S, dh)
    ctx2 = ctx.reshape(batch * seq, dh)                         # leading merge: free
    contrib = jnp.dot(ctx2.astype(jnp.bfloat16), wo_ref[...],
                      preferred_element_type=jnp.float32)       # (B*S, D)

    # ---- accumulate the per-head out-projection into the residual stream ----
    @pl.when(head < n_heads - 1)
    def _acc():
        x_scr[...] = x_scr[...] + contrib

    # ---- last head: finish attention, then MLP (QuickGELU) ----
    @pl.when(head == n_heads - 1)
    def _mlp():
        x = x_scr[...] + contrib + bo_ref[...]
        h2 = _layer_norm(x, ln2w_ref[...], ln2b_ref[...])
        u = jnp.dot(h2.astype(jnp.bfloat16), w1_ref[...],
                    preferred_element_type=jnp.float32) + b1_ref[...]
        u = u * jax.nn.sigmoid(1.702 * u)                       # QuickGELU
        x = x + jnp.dot(u.astype(jnp.bfloat16), w2_ref[...],
                        preferred_element_type=jnp.float32) + b2_ref[...]
        x_scr[...] = x

    # ---- very last step: EOT gather (one-hot matmul) + ln_final + proj ----
    @pl.when((head == n_heads - 1) & (layer == n_layers - 1))
    def _epilogue():
        xe = jnp.dot(onehot_ref[...], x_scr[...],
                     preferred_element_type=jnp.float32)        # (B, D) exact row pick
        y = _layer_norm(xe, lnfw_ref[...], lnfb_ref[...])
        out_ref[...] = jnp.dot(y, proj_ref[...],
                               preferred_element_type=jnp.float32)


# ------------------------------ parameters -----------------------------------
def init_params(key):
    def rnd(k, shape, scale=0.02):
        return scale * jax.random.normal(k, shape, jnp.float32)

    keys = iter(jax.random.split(key, 12 * L + 4))
    layers = []
    for _ in range(L):
        layers.append(dict(
            ln1_w=1.0 + rnd(next(keys), (D,), 0.1),
            ln1_b=rnd(next(keys), (D,), 0.1),
            w_qkv=rnd(next(keys), (3 * D, D)),        # torch in_proj_weight
            b_qkv=rnd(next(keys), (3 * D,), 0.05),
            w_o=rnd(next(keys), (D, D)),              # torch out_proj.weight
            b_o=rnd(next(keys), (D,), 0.05),
            ln2_w=1.0 + rnd(next(keys), (D,), 0.1),
            ln2_b=rnd(next(keys), (D,), 0.1),
            w_fc1=rnd(next(keys), (4 * D, D)),
            b_fc1=rnd(next(keys), (4 * D,), 0.05),
            w_fc2=rnd(next(keys), (D, 4 * D)),
            b_fc2=rnd(next(keys), (D,), 0.05),
        ))
    return dict(
        pos=rnd(next(keys), (S, D), 0.01),
        layers=layers,
        ln_final_w=1.0 + rnd(next(keys), (D,), 0.1),
        ln_final_b=rnd(next(keys), (D,), 0.1),
        text_projection=rnd(next(keys), (D, E)),
    )


# ------------------------------- forward --------------------------------------
def text_encoder_forward(prompts, tokenized_prompts, params):
    layers = params['layers']
    nl = len(layers)
    scale = 1.0 / float(DH) ** 0.5

    def stack(name):
        return jnp.stack([lp[name] for lp in layers])

    # --- wrapper-side layout plumbing (one-time, plain XLA): stack per-layer
    # params, split per head, pre-transpose so the kernel only does `x @ W`,
    # fold the attention scale into w_q/b_q, and cast matmul weights to bf16.
    w_qkv = stack('w_qkv')                                 # (L, 3D, D) torch (out,in)
    b_qkv = stack('b_qkv')                                 # (L, 3D)

    def per_head_w(w_full, scl=1.0):                       # (L, D, D) out-dim = (H, dh)
        w = w_full.reshape(nl, H, DH, D)                   # (L, H, dh, D_in)
        w = jnp.transpose(w, (0, 1, 3, 2)) * scl           # (L, H, D_in, dh)
        return w.astype(jnp.bfloat16)

    def per_head_b(b_full, scl=1.0):
        return (b_full.reshape(nl, H, 1, DH) * scl).astype(jnp.float32)

    w_q = per_head_w(w_qkv[:, 0 * D:1 * D, :], scale)
    w_k = per_head_w(w_qkv[:, 1 * D:2 * D, :])
    w_v = per_head_w(w_qkv[:, 2 * D:3 * D, :])
    b_q = per_head_b(b_qkv[:, 0 * D:1 * D], scale)
    b_k = per_head_b(b_qkv[:, 1 * D:2 * D])
    b_v = per_head_b(b_qkv[:, 2 * D:3 * D])

    w_o = jnp.transpose(stack('w_o'), (0, 2, 1))           # (L, D_in, D_out)
    w_o = w_o.reshape(nl, H, DH, D).astype(jnp.bfloat16)   # (L, H, dh, D_out)
    b_o = stack('b_o')[:, None, :]                         # (L, 1, D)

    ln1_w = stack('ln1_w')[:, None, :]
    ln1_b = stack('ln1_b')[:, None, :]
    ln2_w = stack('ln2_w')[:, None, :]
    ln2_b = stack('ln2_b')[:, None, :]
    w_fc1 = jnp.transpose(stack('w_fc1'), (0, 2, 1)).astype(jnp.bfloat16)  # (L, D, 4D)
    b_fc1 = stack('b_fc1')[:, None, :]
    w_fc2 = jnp.transpose(stack('w_fc2'), (0, 2, 1)).astype(jnp.bfloat16)  # (L, 4D, D)
    b_fc2 = stack('b_fc2')[:, None, :]
    lnf_w = params['ln_final_w'][None, :]
    lnf_b = params['ln_final_b'][None, :]
    proj = params['text_projection']

    # initial activations (DMA'd once into the VMEM scratch at layer 0)
    x0 = (prompts + params['pos'][None, :, :]).reshape(B * S, D).astype(jnp.float32)

    # one-hot EOT selector: row b picks flat row b*S + argmax(tokens[b])
    eot = jnp.argmax(tokenized_prompts, axis=-1)
    flat_idx = jnp.arange(B) * S + eot                     # (B,)
    onehot = (flat_idx[:, None] == jnp.arange(B * S)[None, :]).astype(jnp.float32)

    def per_layer_head(shape):     # stacked (L, H, *shape); leading dims squeezed
        return pl.BlockSpec((None, None) + shape,
                            lambda l, h: (l, h) + (0,) * len(shape))

    def per_layer(shape):          # stacked (L, *shape); constant across heads
        return pl.BlockSpec((None,) + shape,
                            lambda l, h: (l,) + (0,) * len(shape))

    def shared(shape):             # same block for every grid step
        return pl.BlockSpec(shape, lambda l, h: (0,) * len(shape))

    grid_spec = pltpu.PrefetchScalarGridSpec(
        num_scalar_prefetch=0,
        grid=(L, H),               # layers outer, heads inner
        in_specs=[
            pl.BlockSpec(memory_space=pl.ANY),              # x0: stays in HBM
            shared((B, B * S)),                             # one-hot EOT selector
            per_layer((1, D)), per_layer((1, D)),           # ln1 w,b
            per_layer_head((D, DH)), per_layer_head((D, DH)), per_layer_head((D, DH)),
            per_layer_head((1, DH)), per_layer_head((1, DH)), per_layer_head((1, DH)),
            per_layer_head((DH, D)),                        # out-proj slice per head
            per_layer((1, D)),                              # out-proj bias
            per_layer((1, D)), per_layer((1, D)),           # ln2 w,b
            per_layer((D, 4 * D)), per_layer((1, 4 * D)),   # fc1 w,b
            per_layer((4 * D, D)), per_layer((1, D)),       # fc2 w,b
            shared((1, D)), shared((1, D)),                 # ln_final w,b
            shared((D, E)),                                 # text_projection
        ],
        out_specs=pl.BlockSpec((B, E), lambda l, h: (0, 0)),
        scratch_shapes=[
            pltpu.VMEM((B * S, D), jnp.float32),            # resident residual stream
            pltpu.VMEM((B * S, D), jnp.float32),            # cached ln_1(x) per layer
            pltpu.SemaphoreType.DMA(()),                    # x0 load semaphore
        ],
    )

    kernel = functools.partial(text_encoder_kernel, batch=B, seq=S)
    return pl.pallas_call(
        kernel,
        out_shape=jax.ShapeDtypeStruct((B, E), jnp.float32),
        grid_spec=grid_spec,
        compiler_params=pltpu.CompilerParams(
            dimension_semantics=("arbitrary", "arbitrary"),   # x carried across both
            vmem_limit_bytes=32 * 1024 * 1024),
    )(x0, onehot,
      ln1_w, ln1_b, w_q, w_k, w_v, b_q, b_k, b_v, w_o, b_o,
      ln2_w, ln2_b, w_fc1, b_fc1, w_fc2, b_fc2, lnf_w, lnf_b, proj)


# ------------------------- pure-JAX reference ---------------------------------
def reference_forward(prompts, tokenized_prompts, params):
    x = prompts + params['pos']
    mask = jnp.where(jnp.tril(jnp.ones((S, S), bool)), 0.0, NEG_INF)
    dh = D // H
    for lp in params['layers']:
        h = _layer_norm(x, lp['ln1_w'], lp['ln1_b'])
        qkv = h @ lp['w_qkv'].T + lp['b_qkv']
        q, k, v = jnp.split(qkv, 3, axis=-1)
        q = q.reshape(B, S, H, dh)
        k = k.reshape(B, S, H, dh)
        v = v.reshape(B, S, H, dh)
        sc = jnp.einsum('bqhd,bkhd->bhqk', q, k) / jnp.sqrt(dh) + mask
        p = jax.nn.softmax(sc, axis=-1)
        a = jnp.einsum('bhqk,bkhd->bqhd', p, v).reshape(B, S, D)
        x = x + a @ lp['w_o'].T + lp['b_o']
        h2 = _layer_norm(x, lp['ln2_w'], lp['ln2_b'])
        u = h2 @ lp['w_fc1'].T + lp['b_fc1']
        u = u * jax.nn.sigmoid(1.702 * u)
        x = x + u @ lp['w_fc2'].T + lp['b_fc2']
    x = _layer_norm(x, params['ln_final_w'], params['ln_final_b'])
    eot = jnp.argmax(tokenized_prompts, axis=-1)
    return x[jnp.arange(B), eot] @ params['text_projection']


# --------------------------------- main ----------------------------------------
if __name__ == "__main__":
    key = jax.random.PRNGKey(0)
    kp, kt, kw = jax.random.split(key, 3)

    prompts = jax.random.normal(kp, (B, S, D), jnp.float32)
    # tokenized prompts: integer token ids; the EOT token carries the max id,
    # so argmax(-1) recovers its position (as in CLIP).
    tokenized = jax.random.randint(kt, (B, S), 1, 100)
    eot_pos = jnp.array([5, 7], dtype=jnp.int32)
    tokenized = tokenized.at[jnp.arange(B), eot_pos].set(49407)

    params = init_params(kw)

    out = text_encoder_forward(prompts, tokenized, params)
    out = jax.block_until_ready(out)

    ref = reference_forward(prompts, tokenized, params)
    assert out.shape == (B, E), out.shape
    # Tolerance accounts for bf16 matmul operands in the kernel vs f32 reference.
    assert np.allclose(np.asarray(out), np.asarray(ref), atol=5e-3, rtol=5e-3), \
        "Pallas output mismatch vs pure-JAX reference"

    print("KERNEL_OK")
</pallas_src>

<mosaic_0001>
module attributes {stable_mosaic.version = 11 : i64} {
  func.func @text_encoder_kernel(%arg0: i32, %arg1: i32, %arg2: memref<16x32xf32, #tpu.memory_space<any>>, %arg3: memref<2x16xf32, #tpu.memory_space<vmem>>, %arg4: memref<1x1x32xf32, #tpu.memory_space<vmem>>, %arg5: memref<1x1x32xf32, #tpu.memory_space<vmem>>, %arg6: memref<1x1x32x8xbf16, #tpu.memory_space<vmem>>, %arg7: memref<1x1x32x8xbf16, #tpu.memory_space<vmem>>, %arg8: memref<1x1x32x8xbf16, #tpu.memory_space<vmem>>, %arg9: memref<1x1x1x8xf32, #tpu.memory_space<vmem>>, %arg10: memref<1x1x1x8xf32, #tpu.memory_space<vmem>>, %arg11: memref<1x1x1x8xf32, #tpu.memory_space<vmem>>, %arg12: memref<1x1x8x32xbf16, #tpu.memory_space<vmem>>, %arg13: memref<1x1x32xf32, #tpu.memory_space<vmem>>, %arg14: memref<1x1x32xf32, #tpu.memory_space<vmem>>, %arg15: memref<1x1x32xf32, #tpu.memory_space<vmem>>, %arg16: memref<1x32x128xbf16, #tpu.memory_space<vmem>>, %arg17: memref<1x1x128xf32, #tpu.memory_space<vmem>>, %arg18: memref<1x128x32xbf16, #tpu.memory_space<vmem>>, %arg19: memref<1x1x32xf32, #tpu.memory_space<vmem>>, %arg20: memref<1x32xf32, #tpu.memory_space<vmem>>, %arg21: memref<1x32xf32, #tpu.memory_space<vmem>>, %arg22: memref<32x16xf32, #tpu.memory_space<vmem>>, %arg23: memref<2x16xf32, #tpu.memory_space<vmem>>, %arg24: memref<16x32xf32, #tpu.memory_space<vmem>>, %arg25: memref<16x32xf32, #tpu.memory_space<vmem>>, %arg26: memref<!tpu.dma_semaphore, #tpu.memory_space<semaphore_mem>>) attributes {dimension_semantics = [#tpu.dimension_semantics<arbitrary>, #tpu.dimension_semantics<arbitrary>], iteration_bounds = array<i64: 2, 4>, scalar_prefetch = 0 : i64, scratch_operands = 3 : i64, tpu.core_type = #tpu.core_type<tc>, window_params = [{}, {pipeline_mode = #tpu.pipeline_mode<synchronous>, transform_indices = @transform_1, window_bounds = array<i64: 2, 16>}, {transform_indices = @transform_2, window_bounds = array<i64: 1, 1, 32>}, {transform_indices = @transform_3, window_bounds = array<i64: 1, 1, 32>}, {transform_indices = @transform_4, window_bounds = array<i64: 1, 1, 32, 8>}, {transform_indices = @transform_5, window_bounds = array<i64: 1, 1, 32, 8>}, {transform_indices = @transform_6, window_bounds = array<i64: 1, 1, 32, 8>}, {transform_indices = @transform_7, window_bounds = array<i64: 1, 1, 1, 8>}, {transform_indices = @transform_8, window_bounds = array<i64: 1, 1, 1, 8>}, {transform_indices = @transform_9, window_bounds = array<i64: 1, 1, 1, 8>}, {transform_indices = @transform_10, window_bounds = array<i64: 1, 1, 8, 32>}, {transform_indices = @transform_11, window_bounds = array<i64: 1, 1, 32>}, {transform_indices = @transform_12, window_bounds = array<i64: 1, 1, 32>}, {transform_indices = @transform_13, window_bounds = array<i64: 1, 1, 32>}, {transform_indices = @transform_14, window_bounds = array<i64: 1, 32, 128>}, {transform_indices = @transform_15, window_bounds = array<i64: 1, 1, 128>}, {transform_indices = @transform_16, window_bounds = array<i64: 1, 128, 32>}, {transform_indices = @transform_17, window_bounds = array<i64: 1, 1, 32>}, {pipeline_mode = #tpu.pipeline_mode<synchronous>, transform_indices = @transform_18, window_bounds = array<i64: 1, 32>}, {pipeline_mode = #tpu.pipeline_mode<synchronous>, transform_indices = @transform_19, window_bounds = array<i64: 1, 32>}, {pipeline_mode = #tpu.pipeline_mode<synchronous>, transform_indices = @transform_20, window_bounds = array<i64: 32, 16>}, {pipeline_mode = #tpu.pipeline_mode<synchronous>, transform_indices = @transform_21, window_bounds = array<i64: 2, 16>}]} {
    %c0_i32 = arith.constant 0 : i32
    %0 = arith.cmpi eq, %arg0, %c0_i32 : i32
    %c0_i32_0 = arith.constant 0 : i32
    %1 = arith.cmpi eq, %arg1, %c0_i32_0 : i32
    %2 = arith.andi %0, %1 : i1
    %3 = arith.extui %2 : i1 to i32
    %c0_i32_1 = arith.constant 0 : i32
    %4 = arith.cmpi ne, %3, %c0_i32_1 : i32
    scf.if %4 {
      tpu.enqueue_dma source(%arg2 : memref<16x32xf32, #tpu.memory_space<any>>) target(%arg24 : memref<16x32xf32, #tpu.memory_space<vmem>>) target_semaphore(%arg26 : memref<!tpu.dma_semaphore, #tpu.memory_space<semaphore_mem>>)
      tpu.wait_dma2 semaphore(%arg26 : memref<!tpu.dma_semaphore, #tpu.memory_space<semaphore_mem>>) src(%arg2 : memref<16x32xf32, #tpu.memory_space<any>>) dst(%arg24 : memref<16x32xf32, #tpu.memory_space<vmem>>)
    } else {
    }
    %c0_i32_2 = arith.constant 0 : i32
    %5 = arith.cmpi eq, %arg1, %c0_i32_2 : i32
    %6 = arith.extui %5 : i1 to i32
    %c0_i32_3 = arith.constant 0 : i32
    %7 = arith.cmpi ne, %6, %c0_i32_3 : i32
    scf.if %7 {
      %c0_47 = arith.constant 0 : index
      %c0_48 = arith.constant 0 : index
      %74 = vector.load %arg24[%c0_47, %c0_48] : memref<16x32xf32, #tpu.memory_space<vmem>>, vector<16x32xf32>
      %c0_49 = arith.constant 0 : index
      %c0_50 = arith.constant 0 : index
      %c0_51 = arith.constant 0 : index
      %75 = vector.load %arg4[%c0_49, %c0_50, %c0_51] : memref<1x1x32xf32, #tpu.memory_space<vmem>>, vector<1x1x32xf32>
      %76 = vector.shape_cast %75 : vector<1x1x32xf32> to vector<1x32xf32>
      %c0_52 = arith.constant 0 : index
      %c0_53 = arith.constant 0 : index
      %c0_54 = arith.constant 0 : index
      %77 = vector.load %arg5[%c0_52, %c0_53, %c0_54] : memref<1x1x32xf32, #tpu.memory_space<vmem>>, vector<1x1x32xf32>
      %78 = vector.shape_cast %77 : vector<1x1x32xf32> to vector<1x32xf32>
      %cst_55 = arith.constant dense<0.000000e+00> : vector<16xf32>
      %79 = vector.multi_reduction <add>, %74, %cst_55 [1] : vector<16x32xf32> to vector<16xf32>
      %80 = vector.shape_cast %79 : vector<16xf32> to vector<16x1xf32>
      %cst_56 = arith.constant 3.200000e+01 : f32
      %81 = vector.broadcast %cst_56 : f32 to vector<16x1xf32>
      %82 = arith.divf %80, %81 : vector<16x1xf32>
      %83 = vector.broadcast %82 : vector<16x1xf32> to vector<16x32xf32>
      %84 = arith.subf %74, %83 : vector<16x32xf32>
      %85 = arith.mulf %84, %84 : vector<16x32xf32>
      %cst_57 = arith.constant dense<0.000000e+00> : vector<16xf32>
      %86 = vector.multi_reduction <add>, %85, %cst_57 [1] : vector<16x32xf32> to vector<16xf32>
      %87 = vector.shape_cast %86 : vector<16xf32> to vector<16x1xf32>
      %cst_58 = arith.constant 3.200000e+01 : f32
      %88 = vector.broadcast %cst_58 : f32 to vector<16x1xf32>
      %89 = arith.divf %87, %88 : vector<16x1xf32>
      %90 = vector.broadcast %82 : vector<16x1xf32> to vector<16x32xf32>
      %91 = arith.subf %74, %90 : vector<16x32xf32>
      %cst_59 = arith.constant 9.99999974E-6 : f32
      %92 = vector.broadcast %cst_59 : f32 to vector<16x1xf32>
      %93 = arith.addf %89, %92 : vector<16x1xf32>
      %94 = math.rsqrt %93 : vector<16x1xf32>
      %95 = vector.broadcast %94 : vector<16x1xf32> to vector<16x32xf32>
      %96 = arith.mulf %91, %95 : vector<16x32xf32>
      %97 = vector.broadcast %76 : vector<1x32xf32> to vector<16x32xf32>
      %98 = arith.mulf %96, %97 : vector<16x32xf32>
      %99 = vector.broadcast %78 : vector<1x32xf32> to vector<16x32xf32>
      %100 = arith.addf %98, %99 : vector<16x32xf32>
      %c0_60 = arith.constant 0 : index
      %c0_61 = arith.constant 0 : index
      %101 = vector.load %arg25[%c0_60, %c0_61] : memref<16x32xf32, #tpu.memory_space<vmem>>, vector<16x32xf32>
      tpu.vector_store %arg25[%c0_60, %c0_61], %100 {strides = array<i32>} : memref<16x32xf32, #tpu.memory_space<vmem>>, vector<16x32xf32>,
    } else {
    }
    %c0 = arith.constant 0 : index
    %c0_4 = arith.constant 0 : index
    %8 = vector.load %arg25[%c0, %c0_4] : memref<16x32xf32, #tpu.memory_space<vmem>>, vector<16x32xf32>
    %9 = arith.truncf %8 : vector<16x32xf32> to vector<16x32xbf16>
    %c0_5 = arith.constant 0 : index
    %c0_6 = arith.constant 0 : index
    %c0_7 = arith.constant 0 : index
    %c0_8 = arith.constant 0 : index
    %10 = vector.load %arg6[%c0_5, %c0_6, %c0_7, %c0_8] : memref<1x1x32x8xbf16, #tpu.memory_space<vmem>>, vector<1x1x32x8xbf16>
    %11 = vector.shape_cast %10 : vector<1x1x32x8xbf16> to vector<32x8xbf16>
    %cst = arith.constant dense<0.000000e+00> : vector<16x8xf32>
    %12 = tpu.matmul %9, %11, %cst {dimension_numbers = #tpu.dot_dimension_numbers<[1], [0], [0], [1], [0, 0, 1, 1], [], []>} : vector<16x32xbf16>, vector<32x8xbf16>, vector<16x8xf32> -> vector<16x8xf32>
    %c0_9 = arith.constant 0 : index
    %c0_10 = arith.constant 0 : index
    %c0_11 = arith.constant 0 : index
    %c0_12 = arith.constant 0 : index
    %13 = vector.load %arg9[%c0_9, %c0_10, %c0_11, %c0_12] : memref<1x1x1x8xf32, #tpu.memory_space<vmem>>, vector<1x1x1x8xf32>
    %14 = vector.shape_cast %13 : vector<1x1x1x8xf32> to vector<1x8xf32>
    %15 = vector.broadcast %14 : vector<1x8xf32> to vector<16x8xf32>
    %16 = arith.addf %12, %15 : vector<16x8xf32>
    %c0_13 = arith.constant 0 : index
    %c0_14 = arith.constant 0 : index
    %c0_15 = arith.constant 0 : index
    %c0_16 = arith.constant 0 : index
    %17 = vector.load %arg7[%c0_13, %c0_14, %c0_15, %c0_16] : memref<1x1x32x8xbf16, #tpu.memory_space<vmem>>, vector<1x1x32x8xbf16>
    %18 = vector.shape_cast %17 : vector<1x1x32x8xbf16> to vector<32x8xbf16>
    %cst_17 = arith.constant dense<0.000000e+00> : vector<16x8xf32>
    %19 = tpu.matmul %9, %18, %cst_17 {dimension_numbers = #tpu.dot_dimension_numbers<[1], [0], [0], [1], [0, 0, 1, 1], [], []>} : vector<16x32xbf16>, vector<32x8xbf16>, vector<16x8xf32> -> vector<16x8xf32>
    %c0_18 = arith.constant 0 : index
    %c0_19 = arith.constant 0 : index
    %c0_20 = arith.constant 0 : index
    %c0_21 = arith.constant 0 : index
    %20 = vector.load %arg10[%c0_18, %c0_19, %c0_20, %c0_21] : memref<1x1x1x8xf32, #tpu.memory_space<vmem>>, vector<1x1x1x8xf32>
    %21 = vector.shape_cast %20 : vector<1x1x1x8xf32> to vector<1x8xf32>
    %22 = vector.broadcast %21 : vector<1x8xf32> to vector<16x8xf32>
    %23 = arith.addf %19, %22 : vector<16x8xf32>
    %c0_22 = arith.constant 0 : index
    %c0_23 = arith.constant 0 : index
    %c0_24 = arith.constant 0 : index
    %c0_25 = arith.constant 0 : index
    %24 = vector.load %arg8[%c0_22, %c0_23, %c0_24, %c0_25] : memref<1x1x32x8xbf16, #tpu.memory_space<vmem>>, vector<1x1x32x8xbf16>
    %25 = vector.shape_cast %24 : vector<1x1x32x8xbf16> to vector<32x8xbf16>
    %cst_26 = arith.constant dense<0.000000e+00> : vector<16x8xf32>
    %26 = tpu.matmul %9, %25, %cst_26 {dimension_numbers = #tpu.dot_dimension_numbers<[1], [0], [0], [1], [0, 0, 1, 1], [], []>} : vector<16x32xbf16>, vector<32x8xbf16>, vector<16x8xf32> -> vector<16x8xf32>
    %c0_27 = arith.constant 0 : index
    %c0_28 = arith.constant 0 : index
    %c0_29 = arith.constant 0 : index
    %c0_30 = arith.constant 0 : index
    %27 = vector.load %arg11[%c0_27, %c0_28, %c0_29, %c0_30] : memref<1x1x1x8xf32, #tpu.memory_space<vmem>>, vector<1x1x1x8xf32>
    %28 = vector.shape_cast %27 : vector<1x1x1x8xf32> to vector<1x8xf32>
    %29 = vector.broadcast %28 : vector<1x8xf32> to vector<16x8xf32>
    %30 = arith.addf %26, %29 : vector<16x8xf32>
    %31 = vector.shape_cast %16 : vector<16x8xf32> to vector<2x8x8xf32>
    %32 = vector.shape_cast %23 : vector<16x8xf32> to vector<2x8x8xf32>
    %33 = vector.shape_cast %30 : vector<16x8xf32> to vector<2x8x8xf32>
    %34 = tpu.iota {dimensions = array<i32: 0>} : vector<8x8xi32>
    %35 = tpu.iota {dimensions = array<i32: 1>} : vector<8x8xi32>
    %36 = arith.cmpi sle, %35, %34 : vector<8x8xi32>
    %cst_31 = arith.constant 0.000000e+00 : f32
    %cst_32 = arith.constant -1.000000e+30 : f32
    %37 = vector.broadcast %cst_31 : f32 to vector<8x8xf32>
    %38 = vector.broadcast %cst_32 : f32 to vector<8x8xf32>
    %39 = arith.select %36, %37, %38 : vector<8x8xi1>, vector<8x8xf32>
    %40 = arith.truncf %31 : vector<2x8x8xf32> to vector<2x8x8xbf16>
    %41 = arith.truncf %32 : vector<2x8x8xf32> to vector<2x8x8xbf16>
    "tpu.trace_start"() <{level = 10 : i32, message = "bqd,bkd->bqk"}> : () -> ()
    %cst_33 = arith.constant dense<0.000000e+00> : vector<2x8x8xf32>
    %42 = tpu.matmul %40, %41, %cst_33 {dimension_numbers = #tpu.dot_dimension_numbers<[2], [2], [1], [1], [0, 0, 0, 1, 1, 1], [0], [0]>} : vector<2x8x8xbf16>, vector<2x8x8xbf16>, vector<2x8x8xf32> -> vector<2x8x8xf32>
    "tpu.trace_stop"() : () -> ()
    %43 = vector.shape_cast %39 : vector<8x8xf32> to vector<1x8x8xf32>
    %44 = vector.broadcast %43 : vector<1x8x8xf32> to vector<2x8x8xf32>
    %45 = arith.addf %42, %44 : vector<2x8x8xf32>
    %cst_34 = arith.constant dense<0xFF800000> : vector<2x8xf32>
    %46 = vector.multi_reduction <maximumf>, %45, %cst_34 [2] : vector<2x8x8xf32> to vector<2x8xf32>
    %47 = vector.shape_cast %46 : vector<2x8xf32> to vector<2x8x1xf32>
    %48 = vector.broadcast %47 : vector<2x8x1xf32> to vector<2x8x8xf32>
    %49 = arith.subf %45, %48 : vector<2x8x8xf32>
    %50 = math.exp %49 : vector<2x8x8xf32>
    %cst_35 = arith.constant dense<0.000000e+00> : vector<2x8xf32>
    %51 = vector.multi_reduction <add>, %50, %cst_35 [2] : vector<2x8x8xf32> to vector<2x8xf32>
    %52 = vector.shape_cast %51 : vector<2x8xf32> to vector<2x8x1xf32>
    %53 = vector.broadcast %52 : vector<2x8x1xf32> to vector<2x8x8xf32>
    %54 = arith.divf %50, %53 : vector<2x8x8xf32>
    %55 = arith.truncf %54 : vector<2x8x8xf32> to vector<2x8x8xbf16>
    %56 = arith.truncf %33 : vector<2x8x8xf32> to vector<2x8x8xbf16>
    "tpu.trace_start"() <{level = 10 : i32, message = "bqk,bkd->bqd"}> : () -> ()
    %cst_36 = arith.constant dense<0.000000e+00> : vector<2x8x8xf32>
    %57 = tpu.matmul %55, %56, %cst_36 {dimension_numbers = #tpu.dot_dimension_numbers<[2], [1], [1], [2], [0, 0, 0, 1, 1, 2], [0], [0]>} : vector<2x8x8xbf16>, vector<2x8x8xbf16>, vector<2x8x8xf32> -> vector<2x8x8xf32>
    "tpu.trace_stop"() : () -> ()
    %58 = vector.shape_cast %57 : vector<2x8x8xf32> to vector<16x8xf32>
    %59 = arith.truncf %58 : vector<16x8xf32> to vector<16x8xbf16>
    %c0_37 = arith.constant 0 : index
    %c0_38 = arith.constant 0 : index
    %c0_39 = arith.constant 0 : index
    %c0_40 = arith.constant 0 : index
    %60 = vector.load %arg12[%c0_37, %c0_38, %c0_39, %c0_40] : memref<1x1x8x32xbf16, #tpu.memory_space<vmem>>, vector<1x1x8x32xbf16>
    %61 = vector.shape_cast %60 : vector<1x1x8x32xbf16> to vector<8x32xbf16>
    %cst_41 = arith.constant dense<0.000000e+00> : vector<16x32xf32>
    %62 = tpu.matmul %59, %61, %cst_41 {dimension_numbers = #tpu.dot_dimension_numbers<[1], [0], [0], [1], [0, 0, 1, 1], [], []>} : vector<16x8xbf16>, vector<8x32xbf16>, vector<16x32xf32> -> vector<16x32xf32>
    %c3_i32 = arith.constant 3 : i32
    %63 = arith.cmpi slt, %arg1, %c3_i32 : i32
    %64 = arith.extui %63 : i1 to i32
    %c0_i32_42 = arith.constant 0 : i32
    %65 = arith.cmpi ne, %64, %c0_i32_42 : i32
    scf.if %65 {
      %c0_47 = arith.constant 0 : index
      %c0_48 = arith.constant 0 : index
      %74 = vector.load %arg24[%c0_47, %c0_48] : memref<16x32xf32, #tpu.memory_space<vmem>>, vector<16x32xf32>
      %75 = arith.addf %74, %62 : vector<16x32xf32>
      %c0_49 = arith.constant 0 : index
      %c0_50 = arith.constant 0 : index
      %76 = vector.load %arg24[%c0_49, %c0_50] : memref<16x32xf32, #tpu.memory_space<vmem>>, vector<16x32xf32>
      tpu.vector_store %arg24[%c0_49, %c0_50], %75 {strides = array<i32>} : memref<16x32xf32, #tpu.memory_space<vmem>>, vector<16x32xf32>,
    } else {
    }
    %c3_i32_43 = arith.constant 3 : i32
    %66 = arith.cmpi eq, %arg1, %c3_i32_43 : i32
    %67 = arith.extui %66 : i1 to i32
    %c0_i32_44 = arith.constant 0 : i32
    %68 = arith.cmpi ne, %67, %c0_i32_44 : i32
    scf.if %68 {
      %c0_47 = arith.constant 0 : index
      %c0_48 = arith.constant 0 : index
      %74 = vector.load %arg24[%c0_47, %c0_48] : memref<16x32xf32, #tpu.memory_space<vmem>>, vector<16x32xf32>
      %75 = arith.addf %74, %62 : vector<16x32xf32>
      %c0_49 = arith.constant 0 : index
      %c0_50 = arith.constant 0 : index
      %c0_51 = arith.constant 0 : index
      %76 = vector.load %arg13[%c0_49, %c0_50, %c0_51] : memref<1x1x32xf32, #tpu.memory_space<vmem>>, vector<1x1x32xf32>
      %77 = vector.shape_cast %76 : vector<1x1x32xf32> to vector<1x32xf32>
      %78 = vector.broadcast %77 : vector<1x32xf32> to vector<16x32xf32>
      %79 = arith.addf %75, %78 : vector<16x32xf32>
      %c0_52 = arith.constant 0 : index
      %c0_53 = arith.constant 0 : index
      %c0_54 = arith.constant 0 : index
      %80 = vector.load %arg14[%c0_52, %c0_53, %c0_54] : memref<1x1x32xf32, #tpu.memory_space<vmem>>, vector<1x1x32xf32>
      %81 = vector.shape_cast %80 : vector<1x1x32xf32> to vector<1x32xf32>
      %c0_55 = arith.constant 0 : index
      %c0_56 = arith.constant 0 : index
      %c0_57 = arith.constant 0 : index
      %82 = vector.load %arg15[%c0_55, %c0_56, %c0_57] : memref<1x1x32xf32, #tpu.memory_space<vmem>>, vector<1x1x32xf32>
      %83 = vector.shape_cast %82 : vector<1x1x32xf32> to vector<1x32xf32>
      %cst_58 = arith.constant dense<0.000000e+00> : vector<16xf32>
      %84 = vector.multi_reduction <add>, %79, %cst_58 [1] : vector<16x32xf32> to vector<16xf32>
      %85 = vector.shape_cast %84 : vector<16xf32> to vector<16x1xf32>
      %cst_59 = arith.constant 3.200000e+01 : f32
      %86 = vector.broadcast %cst_59 : f32 to vector<16x1xf32>
      %87 = arith.divf %85, %86 : vector<16x1xf32>
      %88 = vector.broadcast %87 : vector<16x1xf32> to vector<16x32xf32>
      %89 = arith.subf %79, %88 : vector<16x32xf32>
      %90 = arith.mulf %89, %89 : vector<16x32xf32>
      %cst_60 = arith.constant dense<0.000000e+00> : vector<16xf32>
      %91 = vector.multi_reduction <add>, %90, %cst_60 [1] : vector<16x32xf32> to vector<16xf32>
      %92 = vector.shape_cast %91 : vector<16xf32> to vector<16x1xf32>
      %cst_61 = arith.constant 3.200000e+01 : f32
      %93 = vector.broadcast %cst_61 : f32 to vector<16x1xf32>
      %94 = arith.divf %92, %93 : vector<16x1xf32>
      %95 = vector.broadcast %87 : vector<16x1xf32> to vector<16x32xf32>
      %96 = arith.subf %79, %95 : vector<16x32xf32>
      %cst_62 = arith.constant 9.99999974E-6 : f32
      %97 = vector.broadcast %cst_62 : f32 to vector<16x1xf32>
      %98 = arith.addf %94, %97 : vector<16x1xf32>
      %99 = math.rsqrt %98 : vector<16x1xf32>
      %100 = vector.broadcast %99 : vector<16x1xf32> to vector<16x32xf32>
      %101 = arith.mulf %96, %100 : vector<16x32xf32>
      %102 = vector.broadcast %81 : vector<1x32xf32> to vector<16x32xf32>
      %103 = arith.mulf %101, %102 : vector<16x32xf32>
      %104 = vector.broadcast %83 : vector<1x32xf32> to vector<16x32xf32>
      %105 = arith.addf %103, %104 : vector<16x32xf32>
      %106 = arith.truncf %105 : vector<16x32xf32> to vector<16x32xbf16>
      %c0_63 = arith.constant 0 : index
      %c0_64 = arith.constant 0 : index
      %c0_65 = arith.constant 0 : index
      %107 = vector.load %arg16[%c0_63, %c0_64, %c0_65] : memref<1x32x128xbf16, #tpu.memory_space<vmem>>, vector<1x32x128xbf16>
      %108 = vector.shape_cast %107 : vector<1x32x128xbf16> to vector<32x128xbf16>
      %cst_66 = arith.constant dense<0.000000e+00> : vector<16x128xf32>
      %109 = tpu.matmul %106, %108, %cst_66 {dimension_numbers = #tpu.dot_dimension_numbers<[1], [0], [0], [1], [0, 0, 1, 1], [], []>} : vector<16x32xbf16>, vector<32x128xbf16>, vector<16x128xf32> -> vector<16x128xf32>
      %c0_67 = arith.constant 0 : index
      %c0_68 = arith.constant 0 : index
      %c0_69 = arith.constant 0 : index
      %110 = vector.load %arg17[%c0_67, %c0_68, %c0_69] : memref<1x1x128xf32, #tpu.memory_space<vmem>>, vector<1x1x128xf32>
      %111 = vector.shape_cast %110 : vector<1x1x128xf32> to vector<1x128xf32>
      %112 = vector.broadcast %111 : vector<1x128xf32> to vector<16x128xf32>
      %113 = arith.addf %109, %112 : vector<16x128xf32>
      %cst_70 = arith.constant 1.702000e+00 : f32
      %114 = vector.broadcast %cst_70 : f32 to vector<16x128xf32>
      %115 = arith.mulf %114, %113 : vector<16x128xf32>
      %116 = arith.negf %115 : vector<16x128xf32>
      %117 = math.exp %116 : vector<16x128xf32>
      %cst_71 = arith.constant 1.000000e+00 : f32
      %118 = vector.broadcast %cst_71 : f32 to vector<16x128xf32>
      %119 = arith.addf %118, %117 : vector<16x128xf32>
      %120 = arith.divf %118, %119 : vector<16x128xf32>
      %121 = arith.mulf %113, %120 : vector<16x128xf32>
      %122 = arith.truncf %121 : vector<16x128xf32> to vector<16x128xbf16>
      %c0_72 = arith.constant 0 : index
      %c0_73 = arith.constant 0 : index
      %c0_74 = arith.constant 0 : index
      %123 = vector.load %arg18[%c0_72, %c0_73, %c0_74] : memref<1x128x32xbf16, #tpu.memory_space<vmem>>, vector<1x128x32xbf16>
      %124 = vector.shape_cast %123 : vector<1x128x32xbf16> to vector<128x32xbf16>
      %cst_75 = arith.constant dense<0.000000e+00> : vector<16x32xf32>
      %125 = tpu.matmul %122, %124, %cst_75 {dimension_numbers = #tpu.dot_dimension_numbers<[1], [0], [0], [1], [0, 0, 1, 1], [], []>} : vector<16x128xbf16>, vector<128x32xbf16>, vector<16x32xf32> -> vector<16x32xf32>
      %126 = arith.addf %79, %125 : vector<16x32xf32>
      %c0_76 = arith.constant 0 : index
      %c0_77 = arith.constant 0 : index
      %c0_78 = arith.constant 0 : index
      %127 = vector.load %arg19[%c0_76, %c0_77, %c0_78] : memref<1x1x32xf32, #tpu.memory_space<vmem>>, vector<1x1x32xf32>
      %128 = vector.shape_cast %127 : vector<1x1x32xf32> to vector<1x32xf32>
      %129 = vector.broadcast %128 : vector<1x32xf32> to vector<16x32xf32>
      %130 = arith.addf %126, %129 : vector<16x32xf32>
      %c0_79 = arith.constant 0 : index
      %c0_80 = arith.constant 0 : index
      %131 = vector.load %arg24[%c0_79, %c0_80] : memref<16x32xf32, #tpu.memory_space<vmem>>, vector<16x32xf32>
      tpu.vector_store %arg24[%c0_79, %c0_80], %130 {strides = array<i32>} : memref<16x32xf32, #tpu.memory_space<vmem>>, vector<16x32xf32>,
    } else {
    }
    %c3_i32_45 = arith.constant 3 : i32
    %69 = arith.cmpi eq, %arg1, %c3_i32_45 : i32
    %c1_i32 = arith.constant 1 : i32
    %70 = arith.cmpi eq, %arg0, %c1_i32 : i32
    %71 = arith.andi %69, %70 : i1
    %72 = arith.extui %71 : i1 to i32
    %c0_i32_46 = arith.constant 0 : i32
    %73 = arith.cmpi ne, %72, %c0_i32_46 : i32
    scf.if %73 {
      %c0_47 = arith.constant 0 : index
      %c0_48 = arith.constant 0 : index
      %74 = vector.load %arg3[%c0_47, %c0_48] : memref<2x16xf32, #tpu.memory_space<vmem>>, vector<2x16xf32>
      %c0_49 = arith.constant 0 : index
      %c0_50 = arith.constant 0 : index
      %75 = vector.load %arg24[%c0_49, %c0_50] : memref<16x32xf32, #tpu.memory_space<vmem>>, vector<16x32xf32>
      %cst_51 = arith.constant dense<0.000000e+00> : vector<2x32xf32>
      %76 = tpu.matmul %74, %75, %cst_51 {dimension_numbers = #tpu.dot_dimension_numbers<[1], [0], [0], [1], [0, 0, 1, 1], [], []>} : vector<2x16xf32>, vector<16x32xf32>, vector<2x32xf32> -> vector<2x32xf32>
      %c0_52 = arith.constant 0 : index
      %c0_53 = arith.constant 0 : index
      %77 = vector.load %arg20[%c0_52, %c0_53] : memref<1x32xf32, #tpu.memory_space<vmem>>, vector<1x32xf32>
      %c0_54 = arith.constant 0 : index
      %c0_55 = arith.constant 0 : index
      %78 = vector.load %arg21[%c0_54, %c0_55] : memref<1x32xf32, #tpu.memory_space<vmem>>, vector<1x32xf32>
      %cst_56 = arith.constant dense<0.000000e+00> : vector<2xf32>
      %79 = vector.multi_reduction <add>, %76, %cst_56 [1] : vector<2x32xf32> to vector<2xf32>
      %80 = vector.shape_cast %79 : vector<2xf32> to vector<2x1xf32>
      %cst_57 = arith.constant 3.200000e+01 : f32
      %81 = vector.broadcast %cst_57 : f32 to vector<2x1xf32>
      %82 = arith.divf %80, %81 : vector<2x1xf32>
      %83 = vector.broadcast %82 : vector<2x1xf32> to vector<2x32xf32>
      %84 = arith.subf %76, %83 : vector<2x32xf32>
      %85 = arith.mulf %84, %84 : vector<2x32xf32>
      %cst_58 = arith.constant dense<0.000000e+00> : vector<2xf32>
      %86 = vector.multi_reduction <add>, %85, %cst_58 [1] : vector<2x32xf32> to vector<2xf32>
      %87 = vector.shape_cast %86 : vector<2xf32> to vector<2x1xf32>
      %cst_59 = arith.constant 3.200000e+01 : f32
      %88 = vector.broadcast %cst_59 : f32 to vector<2x1xf32>
      %89 = arith.divf %87, %88 : vector<2x1xf32>
      %90 = vector.broadcast %82 : vector<2x1xf32> to vector<2x32xf32>
      %91 = arith.subf %76, %90 : vector<2x32xf32>
      %cst_60 = arith.constant 9.99999974E-6 : f32
      %92 = vector.broadcast %cst_60 : f32 to vector<2x1xf32>
      %93 = arith.addf %89, %92 : vector<2x1xf32>
      %94 = math.rsqrt %93 : vector<2x1xf32>
      %95 = vector.broadcast %94 : vector<2x1xf32> to vector<2x32xf32>
      %96 = arith.mulf %91, %95 : vector<2x32xf32>
      %97 = vector.broadcast %77 : vector<1x32xf32> to vector<2x32xf32>
      %98 = arith.mulf %96, %97 : vector<2x32xf32>
      %99 = vector.broadcast %78 : vector<1x32xf32> to vector<2x32xf32>
      %100 = arith.addf %98, %99 : vector<2x32xf32>
      %c0_61 = arith.constant 0 : index
      %c0_62 = arith.constant 0 : index
      %101 = vector.load %arg22[%c0_61, %c0_62] : memref<32x16xf32, #tpu.memory_space<vmem>>, vector<32x16xf32>
      %cst_63 = arith.constant dense<0.000000e+00> : vector<2x16xf32>
      %102 = tpu.matmul %100, %101, %cst_63 {dimension_numbers = #tpu.dot_dimension_numbers<[1], [0], [0], [1], [0, 0, 1, 1], [], []>} : vector<2x32xf32>, vector<32x16xf32>, vector<2x16xf32> -> vector<2x16xf32>
      %c0_64 = arith.constant 0 : index
      %c0_65 = arith.constant 0 : index
      %103 = vector.load %arg23[%c0_64, %c0_65] : memref<2x16xf32, #tpu.memory_space<vmem>>, vector<2x16xf32>
      tpu.vector_store %arg23[%c0_64, %c0_65], %102 {strides = array<i32>} : memref<2x16xf32, #tpu.memory_space<vmem>>, vector<2x16xf32>,
    } else {
    }
    return
  }
  func.func @transform_1(%arg0: i32, %arg1: i32) -> (i32, i32) {
    %c0_i32 = arith.constant 0 : i32
    %c0_i32_0 = arith.constant 0 : i32
    %c0_i32_1 = arith.constant 0 : i32
    return %c0_i32, %c0_i32_0 : i32, i32
  }
  func.func @transform_2(%arg0: i32, %arg1: i32) -> (i32, i32, i32) {
    %c0_i32 = arith.constant 0 : i32
    %c0_i32_0 = arith.constant 0 : i32
    %c0_i32_1 = arith.constant 0 : i32
    return %arg0, %c0_i32, %c0_i32_0 : i32, i32, i32
  }
  func.func @transform_3(%arg0: i32, %arg1: i32) -> (i32, i32, i32) {
    %c0_i32 = arith.constant 0 : i32
    %c0_i32_0 = arith.constant 0 : i32
    %c0_i32_1 = arith.constant 0 : i32
    return %arg0, %c0_i32, %c0_i32_0 : i32, i32, i32
  }
  func.func @transform_4(%arg0: i32, %arg1: i32) -> (i32, i32, i32, i32) {
    %c0_i32 = arith.constant 0 : i32
    %c0_i32_0 = arith.constant 0 : i32
    %c0_i32_1 = arith.constant 0 : i32
    return %arg0, %arg1, %c0_i32, %c0_i32_0 : i32, i32, i32, i32
  }
  func.func @transform_5(%arg0: i32, %arg1: i32) -> (i32, i32, i32, i32) {
    %c0_i32 = arith.constant 0 : i32
    %c0_i32_0 = arith.constant 0 : i32
    %c0_i32_1 = arith.constant 0 : i32
    return %arg0, %arg1, %c0_i32, %c0_i32_0 : i32, i32, i32, i32
  }
  func.func @transform_6(%arg0: i32, %arg1: i32) -> (i32, i32, i32, i32) {
    %c0_i32 = arith.constant 0 : i32
    %c0_i32_0 = arith.constant 0 : i32
    %c0_i32_1 = arith.constant 0 : i32
    return %arg0, %arg1, %c0_i32, %c0_i32_0 : i32, i32, i32, i32
  }
  func.func @transform_7(%arg0: i32, %arg1: i32) -> (i32, i32, i32, i32) {
    %c0_i32 = arith.constant 0 : i32
    %c0_i32_0 = arith.constant 0 : i32
    %c0_i32_1 = arith.constant 0 : i32
    return %arg0, %arg1, %c0_i32, %c0_i32_0 : i32, i32, i32, i32
  }
  func.func @transform_8(%arg0: i32, %arg1: i32) -> (i32, i32, i32, i32) {
    %c0_i32 = arith.constant 0 : i32
    %c0_i32_0 = arith.constant 0 : i32
    %c0_i32_1 = arith.constant 0 : i32
    return %arg0, %arg1, %c0_i32, %c0_i32_0 : i32, i32, i32, i32
  }
  func.func @transform_9(%arg0: i32, %arg1: i32) -> (i32, i32, i32, i32) {
    %c0_i32 = arith.constant 0 : i32
    %c0_i32_0 = arith.constant 0 : i32
    %c0_i32_1 = arith.constant 0 : i32
    return %arg0, %arg1, %c0_i32, %c0_i32_0 : i32, i32, i32, i32
  }
  func.func @transform_10(%arg0: i32, %arg1: i32) -> (i32, i32, i32, i32) {
    %c0_i32 = arith.constant 0 : i32
    %c0_i32_0 = arith.constant 0 : i32
    %c0_i32_1 = arith.constant 0 : i32
    return %arg0, %arg1, %c0_i32, %c0_i32_0 : i32, i32, i32, i32
  }
  func.func @transform_11(%arg0: i32, %arg1: i32) -> (i32, i32, i32) {
    %c0_i32 = arith.constant 0 : i32
    %c0_i32_0 = arith.constant 0 : i32
    %c0_i32_1 = arith.constant 0 : i32
    return %arg0, %c0_i32, %c0_i32_0 : i32, i32, i32
  }
  func.func @transform_12(%arg0: i32, %arg1: i32) -> (i32, i32, i32) {
    %c0_i32 = arith.constant 0 : i32
    %c0_i32_0 = arith.constant 0 : i32
    %c0_i32_1 = arith.constant 0 : i32
    return %arg0, %c0_i32, %c0_i32_0 : i32, i32, i32
  }
  func.func @transform_13(%arg0: i32, %arg1: i32) -> (i32, i32, i32) {
    %c0_i32 = arith.constant 0 : i32
    %c0_i32_0 = arith.constant 0 : i32
    %c0_i32_1 = arith.constant 0 : i32
    return %arg0, %c0_i32, %c0_i32_0 : i32, i32, i32
  }
  func.func @transform_14(%arg0: i32, %arg1: i32) -> (i32, i32, i32) {
    %c0_i32 = arith.constant 0 : i32
    %c0_i32_0 = arith.constant 0 : i32
    %c0_i32_1 = arith.constant 0 : i32
    return %arg0, %c0_i32, %c0_i32_0 : i32, i32, i32
  }
  func.func @transform_15(%arg0: i32, %arg1: i32) -> (i32, i32, i32) {
    %c0_i32 = arith.constant 0 : i32
    %c0_i32_0 = arith.constant 0 : i32
    %c0_i32_1 = arith.constant 0 : i32
    return %arg0, %c0_i32, %c0_i32_0 : i32, i32, i32
  }
  func.func @transform_16(%arg0: i32, %arg1: i32) -> (i32, i32, i32) {
    %c0_i32 = arith.constant 0 : i32
    %c0_i32_0 = arith.constant 0 : i32
    %c0_i32_1 = arith.constant 0 : i32
    return %arg0, %c0_i32, %c0_i32_0 : i32, i32, i32
  }
  func.func @transform_17(%arg0: i32, %arg1: i32) -> (i32, i32, i32) {
    %c0_i32 = arith.constant 0 : i32
    %c0_i32_0 = arith.constant 0 : i32
    %c0_i32_1 = arith.constant 0 : i32
    return %arg0, %c0_i32, %c0_i32_0 : i32, i32, i32
  }
  func.func @transform_18(%arg0: i32, %arg1: i32) -> (i32, i32) {
    %c0_i32 = arith.constant 0 : i32
    %c0_i32_0 = arith.constant 0 : i32
    %c0_i32_1 = arith.constant 0 : i32
    return %c0_i32, %c0_i32_0 : i32, i32
  }
  func.func @transform_19(%arg0: i32, %arg1: i32) -> (i32, i32) {
    %c0_i32 = arith.constant 0 : i32
    %c0_i32_0 = arith.constant 0 : i32
    %c0_i32_1 = arith.constant 0 : i32
    return %c0_i32, %c0_i32_0 : i32, i32
  }
  func.func @transform_20(%arg0: i32, %arg1: i32) -> (i32, i32) {
    %c0_i32 = arith.constant 0 : i32
    %c0_i32_0 = arith.constant 0 : i32
    %c0_i32_1 = arith.constant 0 : i32
    return %c0_i32, %c0_i32_0 : i32, i32
  }
  func.func @transform_21(%arg0: i32, %arg1: i32) -> (i32, i32) {
    %c0_i32 = arith.constant 0 : i32
    %c0_i32_0 = arith.constant 0 : i32
    %c0_i32_1 = arith.constant 0 : i32
    return %c0_i32, %c0_i32_0 : i32, i32
  }
}

</mosaic_0001>

<llo_original>
// kernel: tpu_custom_call.1
$region0: #{tpu_custom_call.1}
  #allocation0 [shape = 'u32[]', space=smem, size = 0x4, offset = 0x4, fixed_abs, tag = 'smem constant byte address 0x4 - core index']
  #allocation1 [shape = 'u32[144,128]{1,0:T(1,128)}', space=vmem, size = 0x12000, scoped, tag = 'internal scratch']
  #allocation2 [shape = 'f32[16,32]{1,0:T(8,128)}', space=vmem, size = 0x2000, scoped, tag = 'scratch operand']
  #allocation3 [shape = 'f32[16,32]{1,0:T(8,128)}', space=vmem, size = 0x2000, scoped, tag = 'scratch operand']
  #allocation4 [shape = 's32[1]{0}', space=sflag, size = 0x4, scoped, tag = 'scratch operand']
  #allocation7 [shape = 's32[]', space=sflag, size = 0x4, offset = 0, fixed_abs, tag = 'sflag constant byte address 0x0 - dummy sync flag']
  %s0 = inlined_call_operand.vmem [shape: f32[16,32], index: 0, kind: input, shape index: {}]
  %s1 = inlined_call_operand.vmem [shape: f32[2,16], index: 1, kind: input, shape index: {}]
  %s2 = inlined_call_operand.vmem [shape: f32[2,1,32], index: 2, kind: input, shape index: {}]
  %s3 = inlined_call_operand.vmem [shape: f32[2,1,32], index: 3, kind: input, shape index: {}]
  %s4 = inlined_call_operand.vmem [shape: bf16[2,4,32,8], index: 4, kind: input, shape index: {}]
  %s5 = inlined_call_operand.vmem [shape: bf16[2,4,32,8], index: 5, kind: input, shape index: {}]
  %s6 = inlined_call_operand.vmem [shape: bf16[2,4,32,8], index: 6, kind: input, shape index: {}]
  %s7 = inlined_call_operand.vmem [shape: f32[2,4,1,8], index: 7, kind: input, shape index: {}]
  %s8 = inlined_call_operand.vmem [shape: f32[2,4,1,8], index: 8, kind: input, shape index: {}]
  %s9 = inlined_call_operand.vmem [shape: f32[2,4,1,8], index: 9, kind: input, shape index: {}]
  %s10 = inlined_call_operand.vmem [shape: bf16[2,4,8,32], index: 10, kind: input, shape index: {}]
  %s11 = inlined_call_operand.vmem [shape: f32[2,1,32], index: 11, kind: input, shape index: {}]
  %s12 = inlined_call_operand.vmem [shape: f32[2,1,32], index: 12, kind: input, shape index: {}]
  %s13 = inlined_call_operand.vmem [shape: f32[2,1,32], index: 13, kind: input, shape index: {}]
  %s14 = inlined_call_operand.vmem [shape: bf16[2,32,128], index: 14, kind: input, shape index: {}]
  %s15 = inlined_call_operand.vmem [shape: f32[2,1,128], index: 15, kind: input, shape index: {}]
  %s16 = inlined_call_operand.vmem [shape: bf16[2,128,32], index: 16, kind: input, shape index: {}]
  %s17 = inlined_call_operand.vmem [shape: f32[2,1,32], index: 17, kind: input, shape index: {}]
  %s18 = inlined_call_operand.vmem [shape: f32[1,32], index: 18, kind: input, shape index: {}]
  %s19 = inlined_call_operand.vmem [shape: f32[1,32], index: 19, kind: input, shape index: {}]
  %s20 = inlined_call_operand.vmem [shape: f32[32,16], index: 20, kind: input, shape index: {}]
  %s21 = inlined_call_operand.hbm [shape: f32[2,16], index: 21, kind: output, shape index: {}]
  %s22 = sld [smem:[#allocation0]]
  $region167: #{tpu_custom_call.1} parent=0
    _
  %s24 = ssub.s32 1, %s22
  %s25 = scalar_select 0, %s24, %s22
  $region1: #{tpu_custom_call.1} parent=0
    #allocation5 [shape = 'u8[1024]{0}', space=vmem, size = 0x400, scoped, tag = 'output window, operand 0, single buffered']
    #allocation6 [shape = 's32[2]{0}', space=sflag, size = 0x8, scoped, tag = 'scoped memory for tpu_custom_call.1']
    %26 = vsyncpa [#allocation6], 0
    loop: start=0, step=1, limit=10
    $region2: #{tpu_custom_call.1} parent=1 // loop_pre_header
      _
    $region3: #{tpu_custom_call.1} parent=1 // loop_header
      %s28 = sphi 0, %s32
      %p29 = scmp.ge.s32.totalorder %s28, 10
      %s35 = sphi 0, %s47
      %s36 = sphi 0, %s43
      %s37 = sphi 0, %s35
      %s38 = sphi 0, %s36
      %s39 = sphi 0, %s37
      %s40 = sphi 0, %s38
      %s48 = sphi 0, %s48
      %s50 = sphi 0, %s48
      %s51 = sphi 0, %s50
      %s65 = sphi 0, %s51
      %s71 = sphi 0, %s73
      %s74 = sphi 0, %s71
      %s75 = sphi 0, %s74
      %s91 = sphi 0, %s75
      %s97 = sphi 0, %s99
      %s100 = sphi 0, %s97
      %s101 = sphi 0, %s100
      %s117 = sphi 0, %s101
      %s125 = sphi 0, %s127
      %s128 = sphi 0, %s125
      %s129 = sphi 0, %s128
      %s145 = sphi 0, %s129
      %s153 = sphi 0, %s155
      %s156 = sphi 0, %s153
      %s157 = sphi 0, %s156
      %s173 = sphi 0, %s157
      %s181 = sphi 0, %s183
      %s184 = sphi 0, %s181
      %s185 = sphi 0, %s184
      %s201 = sphi 0, %s185
      %s209 = sphi 0, %s211
      %s212 = sphi 0, %s209
      %s213 = sphi 0, %s212
      %s229 = sphi 0, %s213
      %s237 = sphi 0, %s239
      %s240 = sphi 0, %s237
      %s241 = sphi 0, %s240
      %s257 = sphi 0, %s241
      %s265 = sphi 0, %s267
      %s268 = sphi 0, %s265
      %s269 = sphi 0, %s268
      %s285 = sphi 0, %s269
      %s293 = sphi 0, %s295
      %s296 = sphi 0, %s293
      %s297 = sphi 0, %s296
      %s313 = sphi 0, %s297
      %s319 = sphi 0, %s321
      %s322 = sphi 0, %s319
      %s323 = sphi 0, %s322
      %s339 = sphi 0, %s323
      %s345 = sphi 0, %s347
      %s348 = sphi 0, %s345
      %s349 = sphi 0, %s348
      %s365 = sphi 0, %s349
      %s371 = sphi 0, %s373
      %s374 = sphi 0, %s371
      %s375 = sphi 0, %s374
      %s391 = sphi 0, %s375
      %s397 = sphi 0, %s399
      %s400 = sphi 0, %s397
      %s401 = sphi 0, %s400
      %s417 = sphi 0, %s401
      %s423 = sphi 0, %s425
      %s426 = sphi 0, %s423
      %s427 = sphi 0, %s426
      %s443 = sphi 0, %s427
      %s449 = sphi 0, %s451
      %s452 = sphi 0, %s449
      %s453 = sphi 0, %s452
      %s469 = sphi 0, %s453
      %s475 = sphi 0, %s477
      %s478 = sphi 0, %s475
      %s479 = sphi 0, %s478
      %s495 = sphi 0, %s479
      %s499 = sphi 0, %s499
      %s501 = sphi 0, %s499
      %s502 = sphi 0, %s501
      %s516 = sphi 0, %s502
      %s520 = sphi 0, %s520
      %s522 = sphi 0, %s520
      %s523 = sphi 0, %s522
      %s537 = sphi 0, %s523
      %s541 = sphi 0, %s541
      %s543 = sphi 0, %s541
      %s544 = sphi 0, %s543
      %s558 = sphi 0, %s544
      %s562 = sphi 0, %s562
      %s564 = sphi 0, %s562
      %s565 = sphi 0, %s564
      %s579 = sphi 0, %s565
    $region4: #{tpu_custom_call.1} parent=1 // loop_header_branch
      %31 = sbr.rel (%p29) target = $region8
    $region5: #{tpu_custom_call.1} parent=1 // loop_body
      %s33 = ssub.s32 %s28, 1
      %s34 = ssub.s32 %s28, 2
      %s41 = sadd.s32 1, %s36
      %p42 = scmp.ge.s32.totalorder %s41, 4
      %s43 = scalar_select %p42, 0, %s41
      %s44 = sadd.s32 1, %s35
      %s45 = scalar_select %p42, %s44, %s35
      %p46 = scmp.ge.s32.totalorder %s45, 2
      %s47 = scalar_select %p46, 0, %s45
      %s49 = sadd.s32 %s48, 1
      %p52 = scmp.eq.s32.totalorder %s28, 7
      %p53 = scmp.ne.s32.totalorder %s48, %s50
      %p54 = scmp.eq.s32.totalorder %s28, 0
      %p55 = por %p53, %p54
      %p56 = scmp.ne.s32.totalorder %s48, %s50
      %p57 = scmp.eq.s32.totalorder %s33, 7
      %p58 = por %p56, %p57
      %p59 = scmp.ne.s32.totalorder %s50, %s51
      %p60 = scmp.eq.s32.totalorder %s33, 0
      %p61 = por %p59, %p60
      %p62 = scmp.ne.s32.totalorder %s50, %s51
      %p63 = scmp.eq.s32.totalorder %s34, 7
      %p64 = por %p62, %p63
      %p66 = scmp.ne.s32.totalorder %s51, %s65
      %p67 = scmp.eq.s32.totalorder %s34, 0
      %p68 = por %p66, %p67
      %s69 = ssub.s32 %s35, %s47
      %p70 = scmp.eq.s32.totalorder %s69, 0
      %s72 = sadd.s32 %s71, 1
      %s73 = scalar_select %p70, %s71, %s72
      %p76 = pneg %p70
      %p77 = scmp.eq.s32.totalorder %s28, 7
      %p78 = por %p76, %p77
      %p79 = scmp.ne.s32.totalorder %s71, %s74
      %p80 = scmp.eq.s32.totalorder %s28, 0
      %p81 = por %p79, %p80
      %p82 = scmp.ne.s32.totalorder %s71, %s74
      %p83 = scmp.eq.s32.totalorder %s33, 7
      %p84 = por %p82, %p83
      %p85 = scmp.ne.s32.totalorder %s74, %s75
      %p86 = scmp.eq.s32.totalorder %s33, 0
      %p87 = por %p85, %p86
      %p88 = scmp.ne.s32.totalorder %s74, %s75
      %p89 = scmp.eq.s32.totalorder %s34, 7
      %p90 = por %p88, %p89
      %p92 = scmp.ne.s32.totalorder %s75, %s91
      %p93 = scmp.eq.s32.totalorder %s34, 0
      %p94 = por %p92, %p93
      %s95 = ssub.s32 %s35, %s47
      %p96 = scmp.eq.s32.totalorder %s95, 0
      %s98 = sadd.s32 %s97, 1
      %s99 = scalar_select %p96, %s97, %s98
      %p102 = pneg %p96
      %p103 = scmp.eq.s32.totalorder %s28, 7
      %p104 = por %p102, %p103
      %p105 = scmp.ne.s32.totalorder %s97, %s100
      %p106 = scmp.eq.s32.totalorder %s28, 0
      %p107 = por %p105, %p106
      %p108 = scmp.ne.s32.totalorder %s97, %s100
      %p109 = scmp.eq.s32.totalorder %s33, 7
      %p110 = por %p108, %p109
      %p111 = scmp.ne.s32.totalorder %s100, %s101
      %p112 = scmp.eq.s32.totalorder %s33, 0
      %p113 = por %p111, %p112
      %p114 = scmp.ne.s32.totalorder %s100, %s101
      %p115 = scmp.eq.s32.totalorder %s34, 7
      %p116 = por %p114, %p115
      %p118 = scmp.ne.s32.totalorder %s101, %s117
      %p119 = scmp.eq.s32.totalorder %s34, 0
      %p120 = por %p118, %p119
      %s121 = ssub.s32 %s35, %s47
      %s122 = ssub.s32 %s36, %s43
      %s123 = sor.u32 %s121, %s122
      %p124 = scmp.eq.s32.totalorder %s123, 0
      %s126 = sadd.s32 %s125, 1
      %s127 = scalar_select %p124, %s125, %s126
      %p130 = pneg %p124
      %p131 = scmp.eq.s32.totalorder %s28, 7
      %p132 = por %p130, %p131
      %p133 = scmp.ne.s32.totalorder %s125, %s128
      %p134 = scmp.eq.s32.totalorder %s28, 0
      %p135 = por %p133, %p134
      %p136 = scmp.ne.s32.totalorder %s125, %s128
      %p137 = scmp.eq.s32.totalorder %s33, 7
      %p138 = por %p136, %p137
      %p139 = scmp.ne.s32.totalorder %s128, %s129
      %p140 = scmp.eq.s32.totalorder %s33, 0
      %p141 = por %p139, %p140
      %p142 = scmp.ne.s32.totalorder %s128, %s129
      %p143 = scmp.eq.s32.totalorder %s34, 7
      %p144 = por %p142, %p143
      %p146 = scmp.ne.s32.totalorder %s129, %s145
      %p147 = scmp.eq.s32.totalorder %s34, 0
      %p148 = por %p146, %p147
      %s149 = ssub.s32 %s35, %s47
      %s150 = ssub.s32 %s36, %s43
      %s151 = sor.u32 %s149, %s150
      %p152 = scmp.eq.s32.totalorder %s151, 0
      %s154 = sadd.s32 %s153, 1
      %s155 = scalar_select %p152, %s153, %s154
      %p158 = pneg %p152
      %p159 = scmp.eq.s32.totalorder %s28, 7
      %p160 = por %p158, %p159
      %p161 = scmp.ne.s32.totalorder %s153, %s156
      %p162 = scmp.eq.s32.totalorder %s28, 0
      %p163 = por %p161, %p162
      %p164 = scmp.ne.s32.totalorder %s153, %s156
      %p165 = scmp.eq.s32.totalorder %s33, 7
      %p166 = por %p164, %p165
      %p167 = scmp.ne.s32.totalorder %s156, %s157
      %p168 = scmp.eq.s32.totalorder %s33, 0
      %p169 = por %p167, %p168
      %p170 = scmp.ne.s32.totalorder %s156, %s157
      %p171 = scmp.eq.s32.totalorder %s34, 7
      %p172 = por %p170, %p171
      %p174 = scmp.ne.s32.totalorder %s157, %s173
      %p175 = scmp.eq.s32.totalorder %s34, 0
      %p176 = por %p174, %p175
      %s177 = ssub.s32 %s35, %s47
      %s178 = ssub.s32 %s36, %s43
      %s179 = sor.u32 %s177, %s178
      %p180 = scmp.eq.s32.totalorder %s179, 0
      %s182 = sadd.s32 %s181, 1
      %s183 = scalar_select %p180, %s181, %s182
      %p186 = pneg %p180
      %p187 = scmp.eq.s32.totalorder %s28, 7
      %p188 = por %p186, %p187
      %p189 = scmp.ne.s32.totalorder %s181, %s184
      %p190 = scmp.eq.s32.totalorder %s28, 0
      %p191 = por %p189, %p190
      %p192 = scmp.ne.s32.totalorder %s181, %s184
      %p193 = scmp.eq.s32.totalorder %s33, 7
      %p194 = por %p192, %p193
      %p195 = scmp.ne.s32.totalorder %s184, %s185
      %p196 = scmp.eq.s32.totalorder %s33, 0
      %p197 = por %p195, %p196
      %p198 = scmp.ne.s32.totalorder %s184, %s185
      %p199 = scmp.eq.s32.totalorder %s34, 7
      %p200 = por %p198, %p199
      %p202 = scmp.ne.s32.totalorder %s185, %s201
      %p203 = scmp.eq.s32.totalorder %s34, 0
      %p204 = por %p202, %p203
      %s205 = ssub.s32 %s35, %s47
      %s206 = ssub.s32 %s36, %s43
      %s207 = sor.u32 %s205, %s206
      %p208 = scmp.eq.s32.totalorder %s207, 0
      %s210 = sadd.s32 %s209, 1
      %s211 = scalar_select %p208, %s209, %s210
      %p214 = pneg %p208
      %p215 = scmp.eq.s32.totalorder %s28, 7
      %p216 = por %p214, %p215
      %p217 = scmp.ne.s32.totalorder %s209, %s212
      %p218 = scmp.eq.s32.totalorder %s28, 0
      %p219 = por %p217, %p218
      %p220 = scmp.ne.s32.totalorder %s209, %s212
      %p221 = scmp.eq.s32.totalorder %s33, 7
      %p222 = por %p220, %p221
      %p223 = scmp.ne.s32.totalorder %s212, %s213
      %p224 = scmp.eq.s32.totalorder %s33, 0
      %p225 = por %p223, %p224
      %p226 = scmp.ne.s32.totalorder %s212, %s213
      %p227 = scmp.eq.s32.totalorder %s34, 7
      %p228 = por %p226, %p227
      %p230 = scmp.ne.s32.totalorder %s213, %s229
      %p231 = scmp.eq.s32.totalorder %s34, 0
      %p232 = por %p230, %p231
      %s233 = ssub.s32 %s35, %s47
      %s234 = ssub.s32 %s36, %s43
      %s235 = sor.u32 %s233, %s234
      %p236 = scmp.eq.s32.totalorder %s235, 0
      %s238 = sadd.s32 %s237, 1
      %s239 = scalar_select %p236, %s237, %s238
      %p242 = pneg %p236
      %p243 = scmp.eq.s32.totalorder %s28, 7
      %p244 = por %p242, %p243
      %p245 = scmp.ne.s32.totalorder %s237, %s240
      %p246 = scmp.eq.s32.totalorder %s28, 0
      %p247 = por %p245, %p246
      %p248 = scmp.ne.s32.totalorder %s237, %s240
      %p249 = scmp.eq.s32.totalorder %s33, 7
      %p250 = por %p248, %p249
      %p251 = scmp.ne.s32.totalorder %s240, %s241
      %p252 = scmp.eq.s32.totalorder %s33, 0
      %p253 = por %p251, %p252
      %p254 = scmp.ne.s32.totalorder %s240, %s241
      %p255 = scmp.eq.s32.totalorder %s34, 7
      %p256 = por %p254, %p255
      %p258 = scmp.ne.s32.totalorder %s241, %s257
      %p259 = scmp.eq.s32.totalorder %s34, 0
      %p260 = por %p258, %p259
      %s261 = ssub.s32 %s35, %s47
      %s262 = ssub.s32 %s36, %s43
      %s263 = sor.u32 %s261, %s262
      %p264 = scmp.eq.s32.totalorder %s263, 0
      %s266 = sadd.s32 %s265, 1
      %s267 = scalar_select %p264, %s265, %s266
      %p270 = pneg %p264
      %p271 = scmp.eq.s32.totalorder %s28, 7
      %p272 = por %p270, %p271
      %p273 = scmp.ne.s32.totalorder %s265, %s268
      %p274 = scmp.eq.s32.totalorder %s28, 0
      %p275 = por %p273, %p274
      %p276 = scmp.ne.s32.totalorder %s265, %s268
      %p277 = scmp.eq.s32.totalorder %s33, 7
      %p278 = por %p276, %p277
      %p279 = scmp.ne.s32.totalorder %s268, %s269
      %p280 = scmp.eq.s32.totalorder %s33, 0
      %p281 = por %p279, %p280
      %p282 = scmp.ne.s32.totalorder %s268, %s269
      %p283 = scmp.eq.s32.totalorder %s34, 7
      %p284 = por %p282, %p283
      %p286 = scmp.ne.s32.totalorder %s269, %s285
      %p287 = scmp.eq.s32.totalorder %s34, 0
      %p288 = por %p286, %p287
      %s289 = ssub.s32 %s35, %s47
      %s290 = ssub.s32 %s36, %s43
      %s291 = sor.u32 %s289, %s290
      %p292 = scmp.eq.s32.totalorder %s291, 0
      %s294 = sadd.s32 %s293, 1
      %s295 = scalar_select %p292, %s293, %s294
      %p298 = pneg %p292
      %p299 = scmp.eq.s32.totalorder %s28, 7
      %p300 = por %p298, %p299
      %p301 = scmp.ne.s32.totalorder %s293, %s296
      %p302 = scmp.eq.s32.totalorder %s28, 0
      %p303 = por %p301, %p302
      %p304 = scmp.ne.s32.totalorder %s293, %s296
      %p305 = scmp.eq.s32.totalorder %s33, 7
      %p306 = por %p304, %p305
      %p307 = scmp.ne.s32.totalorder %s296, %s297
      %p308 = scmp.eq.s32.totalorder %s33, 0
      %p309 = por %p307, %p308
      %p310 = scmp.ne.s32.totalorder %s296, %s297
      %p311 = scmp.eq.s32.totalorder %s34, 7
      %p312 = por %p310, %p311
      %p314 = scmp.ne.s32.totalorder %s297, %s313
      %p315 = scmp.eq.s32.totalorder %s34, 0
      %p316 = por %p314, %p315
      %s317 = ssub.s32 %s35, %s47
      %p318 = scmp.eq.s32.totalorder %s317, 0
      %s320 = sadd.s32 %s319, 1
      %s321 = scalar_select %p318, %s319, %s320
      %p324 = pneg %p318
      %p325 = scmp.eq.s32.totalorder %s28, 7
      %p326 = por %p324, %p325
      %p327 = scmp.ne.s32.totalorder %s319, %s322
      %p328 = scmp.eq.s32.totalorder %s28, 0
      %p329 = por %p327, %p328
      %p330 = scmp.ne.s32.totalorder %s319, %s322
      %p331 = scmp.eq.s32.totalorder %s33, 7
      %p332 = por %p330, %p331
      %p333 = scmp.ne.s32.totalorder %s322, %s323
      %p334 = scmp.eq.s32.totalorder %s33, 0
      %p335 = por %p333, %p334
      %p336 = scmp.ne.s32.totalorder %s322, %s323
      %p337 = scmp.eq.s32.totalorder %s34, 7
      %p338 = por %p336, %p337
      %p340 = scmp.ne.s32.totalorder %s323, %s339
      %p341 = scmp.eq.s32.totalorder %s34, 0
      %p342 = por %p340, %p341
      %s343 = ssub.s32 %s35, %s47
      %p344 = scmp.eq.s32.totalorder %s343, 0
      %s346 = sadd.s32 %s345, 1
      %s347 = scalar_select %p344, %s345, %s346
      %p350 = pneg %p344
      %p351 = scmp.eq.s32.totalorder %s28, 7
      %p352 = por %p350, %p351
      %p353 = scmp.ne.s32.totalorder %s345, %s348
      %p354 = scmp.eq.s32.totalorder %s28, 0
      %p355 = por %p353, %p354
      %p356 = scmp.ne.s32.totalorder %s345, %s348
      %p357 = scmp.eq.s32.totalorder %s33, 7
      %p358 = por %p356, %p357
      %p359 = scmp.ne.s32.totalorder %s348, %s349
      %p360 = scmp.eq.s32.totalorder %s33, 0
      %p361 = por %p359, %p360
      %p362 = scmp.ne.s32.totalorder %s348, %s349
      %p363 = scmp.eq.s32.totalorder %s34, 7
      %p364 = por %p362, %p363
      %p366 = scmp.ne.s32.totalorder %s349, %s365
      %p367 = scmp.eq.s32.totalorder %s34, 0
      %p368 = por %p366, %p367
      %s369 = ssub.s32 %s35, %s47
      %p370 = scmp.eq.s32.totalorder %s369, 0
      %s372 = sadd.s32 %s371, 1
      %s373 = scalar_select %p370, %s371, %s372
      %p376 = pneg %p370
      %p377 = scmp.eq.s32.totalorder %s28, 7
      %p378 = por %p376, %p377
      %p379 = scmp.ne.s32.totalorder %s371, %s374
      %p380 = scmp.eq.s32.totalorder %s28, 0
      %p381 = por %p379, %p380
      %p382 = scmp.ne.s32.totalorder %s371, %s374
      %p383 = scmp.eq.s32.totalorder %s33, 7
      %p384 = por %p382, %p383
      %p385 = scmp.ne.s32.totalorder %s374, %s375
      %p386 = scmp.eq.s32.totalorder %s33, 0
      %p387 = por %p385, %p386
      %p388 = scmp.ne.s32.totalorder %s374, %s375
      %p389 = scmp.eq.s32.totalorder %s34, 7
      %p390 = por %p388, %p389
      %p392 = scmp.ne.s32.totalorder %s375, %s391
      %p393 = scmp.eq.s32.totalorder %s34, 0
      %p394 = por %p392, %p393
      %s395 = ssub.s32 %s35, %s47
      %p396 = scmp.eq.s32.totalorder %s395, 0
      %s398 = sadd.s32 %s397, 1
      %s399 = scalar_select %p396, %s397, %s398
      %p402 = pneg %p396
      %p403 = scmp.eq.s32.totalorder %s28, 7
      %p404 = por %p402, %p403
      %p405 = scmp.ne.s32.totalorder %s397, %s400
      %p406 = scmp.eq.s32.totalorder %s28, 0
      %p407 = por %p405, %p406
      %p408 = scmp.ne.s32.totalorder %s397, %s400
      %p409 = scmp.eq.s32.totalorder %s33, 7
      %p410 = por %p408, %p409
      %p411 = scmp.ne.s32.totalorder %s400, %s401
      %p412 = scmp.eq.s32.totalorder %s33, 0
      %p413 = por %p411, %p412
      %p414 = scmp.ne.s32.totalorder %s400, %s401
      %p415 = scmp.eq.s32.totalorder %s34, 7
      %p416 = por %p414, %p415
      %p418 = scmp.ne.s32.totalorder %s401, %s417
      %p419 = scmp.eq.s32.totalorder %s34, 0
      %p420 = por %p418, %p419
      %s421 = ssub.s32 %s35, %s47
      %p422 = scmp.eq.s32.totalorder %s421, 0
      %s424 = sadd.s32 %s423, 1
      %s425 = scalar_select %p422, %s423, %s424
      %p428 = pneg %p422
      %p429 = scmp.eq.s32.totalorder %s28, 7
      %p430 = por %p428, %p429
      %p431 = scmp.ne.s32.totalorder %s423, %s426
      %p432 = scmp.eq.s32.totalorder %s28, 0
      %p433 = por %p431, %p432
      %p434 = scmp.ne.s32.totalorder %s423, %s426
      %p435 = scmp.eq.s32.totalorder %s33, 7
      %p436 = por %p434, %p435
      %p437 = scmp.ne.s32.totalorder %s426, %s427
      %p438 = scmp.eq.s32.totalorder %s33, 0
      %p439 = por %p437, %p438
      %p440 = scmp.ne.s32.totalorder %s426, %s427
      %p441 = scmp.eq.s32.totalorder %s34, 7
      %p442 = por %p440, %p441
      %p444 = scmp.ne.s32.totalorder %s427, %s443
      %p445 = scmp.eq.s32.totalorder %s34, 0
      %p446 = por %p444, %p445
      %s447 = ssub.s32 %s35, %s47
      %p448 = scmp.eq.s32.totalorder %s447, 0
      %s450 = sadd.s32 %s449, 1
      %s451 = scalar_select %p448, %s449, %s450
      %p454 = pneg %p448
      %p455 = scmp.eq.s32.totalorder %s28, 7
      %p456 = por %p454, %p455
      %p457 = scmp.ne.s32.totalorder %s449, %s452
      %p458 = scmp.eq.s32.totalorder %s28, 0
      %p459 = por %p457, %p458
      %p460 = scmp.ne.s32.totalorder %s449, %s452
      %p461 = scmp.eq.s32.totalorder %s33, 7
      %p462 = por %p460, %p461
      %p463 = scmp.ne.s32.totalorder %s452, %s453
      %p464 = scmp.eq.s32.totalorder %s33, 0
      %p465 = por %p463, %p464
      %p466 = scmp.ne.s32.totalorder %s452, %s453
      %p467 = scmp.eq.s32.totalorder %s34, 7
      %p468 = por %p466, %p467
      %p470 = scmp.ne.s32.totalorder %s453, %s469
      %p471 = scmp.eq.s32.totalorder %s34, 0
      %p472 = por %p470, %p471
      %s473 = ssub.s32 %s35, %s47
      %p474 = scmp.eq.s32.totalorder %s473, 0
      %s476 = sadd.s32 %s475, 1
      %s477 = scalar_select %p474, %s475, %s476
      %p480 = pneg %p474
      %p481 = scmp.eq.s32.totalorder %s28, 7
      %p482 = por %p480, %p481
      %p483 = scmp.ne.s32.totalorder %s475, %s478
      %p484 = scmp.eq.s32.totalorder %s28, 0
      %p485 = por %p483, %p484
      %p486 = scmp.ne.s32.totalorder %s475, %s478
      %p487 = scmp.eq.s32.totalorder %s33, 7
      %p488 = por %p486, %p487
      %p489 = scmp.ne.s32.totalorder %s478, %s479
      %p490 = scmp.eq.s32.totalorder %s33, 0
      %p491 = por %p489, %p490
      %p492 = scmp.ne.s32.totalorder %s478, %s479
      %p493 = scmp.eq.s32.totalorder %s34, 7
      %p494 = por %p492, %p493
      %p496 = scmp.ne.s32.totalorder %s479, %s495
      %p497 = scmp.eq.s32.totalorder %s34, 0
      %p498 = por %p496, %p497
      %s500 = sadd.s32 %s499, 1
      %p503 = scmp.eq.s32.totalorder %s28, 7
      %p504 = scmp.ne.s32.totalorder %s499, %s501
      %p505 = scmp.eq.s32.totalorder %s28, 0
      %p506 = por %p504, %p505
      %p507 = scmp.ne.s32.totalorder %s499, %s501
      %p508 = scmp.eq.s32.totalorder %s33, 7
      %p509 = por %p507, %p508
      %p510 = scmp.ne.s32.totalorder %s501, %s502
      %p511 = scmp.eq.s32.totalorder %s33, 0
      %p512 = por %p510, %p511
      %p513 = scmp.ne.s32.totalorder %s501, %s502
      %p514 = scmp.eq.s32.totalorder %s34, 7
      %p515 = por %p513, %p514
      %p517 = scmp.ne.s32.totalorder %s502, %s516
      %p518 = scmp.eq.s32.totalorder %s34, 0
      %p519 = por %p517, %p518
      %s521 = sadd.s32 %s520, 1
      %p524 = scmp.eq.s32.totalorder %s28, 7
      %p525 = scmp.ne.s32.totalorder %s520, %s522
      %p526 = scmp.eq.s32.totalorder %s28, 0
      %p527 = por %p525, %p526
      %p528 = scmp.ne.s32.totalorder %s520, %s522
      %p529 = scmp.eq.s32.totalorder %s33, 7
      %p530 = por %p528, %p529
      %p531 = scmp.ne.s32.totalorder %s522, %s523
      %p532 = scmp.eq.s32.totalorder %s33, 0
      %p533 = por %p531, %p532
      %p534 = scmp.ne.s32.totalorder %s522, %s523
      %p535 = scmp.eq.s32.totalorder %s34, 7
      %p536 = por %p534, %p535
      %p538 = scmp.ne.s32.totalorder %s523, %s537
      %p539 = scmp.eq.s32.totalorder %s34, 0
      %p540 = por %p538, %p539
      %s542 = sadd.s32 %s541, 1
      %p545 = scmp.eq.s32.totalorder %s28, 7
      %p546 = scmp.ne.s32.totalorder %s541, %s543
      %p547 = scmp.eq.s32.totalorder %s28, 0
      %p548 = por %p546, %p547
      %p549 = scmp.ne.s32.totalorder %s541, %s543
      %p550 = scmp.eq.s32.totalorder %s33, 7
      %p551 = por %p549, %p550
      %p552 = scmp.ne.s32.totalorder %s543, %s544
      %p553 = scmp.eq.s32.totalorder %s33, 0
      %p554 = por %p552, %p553
      %p555 = scmp.ne.s32.totalorder %s543, %s544
      %p556 = scmp.eq.s32.totalorder %s34, 7
      %p557 = por %p555, %p556
      %p559 = scmp.ne.s32.totalorder %s544, %s558
      %p560 = scmp.eq.s32.totalorder %s34, 0
      %p561 = por %p559, %p560
      %s563 = sadd.s32 %s562, 1
      %p566 = scmp.eq.s32.totalorder %s28, 7
      %p567 = scmp.ne.s32.totalorder %s562, %s564
      %p568 = scmp.eq.s32.totalorder %s28, 0
      %p569 = por %p567, %p568
      %p570 = scmp.ne.s32.totalorder %s562, %s564
      %p571 = scmp.eq.s32.totalorder %s33, 7
      %p572 = por %p570, %p571
      %p573 = scmp.ne.s32.totalorder %s564, %s565
      %p574 = scmp.eq.s32.totalorder %s33, 0
      %p575 = por %p573, %p574
      %p576 = scmp.ne.s32.totalorder %s564, %s565
      %p577 = scmp.eq.s32.totalorder %s34, 7
      %p578 = por %p576, %p577
      %p580 = scmp.ne.s32.totalorder %s565, %s579
      %p581 = scmp.eq.s32.totalorder %s34, 0
      %p582 = por %p580, %p581
      %p583 = scmp.le.s32.totalorder 1, %s28
      %p584 = scmp.lt.s32.totalorder %s28, 9
      %p585 = pnand %p583, %p584
      %p586 = pneg %p585
      // Predicated region
      $region9: #{tpu_custom_call.1} parent=5 // pred_check
        _
      $region10: #{tpu_custom_call.1} parent=5 // pred_check_branch
        %588 = sbr.rel (%p585) target = $region12
      $region11: #{tpu_custom_call.1} parent=5 // pred_region
        %s589 = ssub.s32 %s28, 1
        // Predicated region
        $region13: #{tpu_custom_call.1} parent=11 // pred_check
          %p590 = pneg %p61
        $region14: #{tpu_custom_call.1} parent=11 // pred_check_branch
          %592 = sbr.rel (%p590) target = $region16
        $region15: #{tpu_custom_call.1} parent=11 // pred_region
          _
        $region16: #{tpu_custom_call.1} parent=11 // pred_fallthru
          _
        // Predicated region
        $region17: #{tpu_custom_call.1} parent=11 // pred_check
          %p593 = pneg %p512
        $region18: #{tpu_custom_call.1} parent=11 // pred_check_branch
          %595 = sbr.rel (%p593) target = $region20
        $region19: #{tpu_custom_call.1} parent=11 // pred_region
          _
        $region20: #{tpu_custom_call.1} parent=11 // pred_fallthru
          _
        // Predicated region
        $region21: #{tpu_custom_call.1} parent=11 // pred_check
          %p596 = pneg %p533
        $region22: #{tpu_custom_call.1} parent=11 // pred_check_branch
          %598 = sbr.rel (%p596) target = $region24
        $region23: #{tpu_custom_call.1} parent=11 // pred_region
          _
        $region24: #{tpu_custom_call.1} parent=11 // pred_fallthru
          _
        // Predicated region
        $region25: #{tpu_custom_call.1} parent=11 // pred_check
          %p599 = pneg %p554
        $region26: #{tpu_custom_call.1} parent=11 // pred_check_branch
          %601 = sbr.rel (%p599) target = $region28
        $region27: #{tpu_custom_call.1} parent=11 // pred_region
          _
        $region28: #{tpu_custom_call.1} parent=11 // pred_fallthru
          _
      $region12: #{tpu_custom_call.1} parent=5 // pred_fallthru
        _
      %p602 = scmp.lt.s32.totalorder %s28, 8
      // Predicated region
      $region29: #{tpu_custom_call.1} parent=5 // pred_check
        %p603 = pneg %p602
      $region30: #{tpu_custom_call.1} parent=5 // pred_check_branch
        %605 = sbr.rel (%p603) target = $region32
      $region31: #{tpu_custom_call.1} parent=5 // pred_region
        // Predicated region
        $region33: #{tpu_custom_call.1} parent=31 // pred_check
          %p606 = pneg %p81
        $region34: #{tpu_custom_call.1} parent=31 // pred_check_branch
          %608 = sbr.rel (%p606) target = $region36
        $region35: #{tpu_custom_call.1} parent=31 // pred_region
          %p609 = scmp.lt.s32.totalorder %s35, 1
          %s610 = scalar_select %p609, %s35, 1
          %s611 = scalar_lea.vmem %s2, %s610
        $region36: #{tpu_custom_call.1} parent=31 // pred_fallthru
          _
        // Predicated region
        $region37: #{tpu_custom_call.1} parent=31 // pred_check
          %p612 = pneg %p107
        $region38: #{tpu_custom_call.1} parent=31 // pred_check_branch
          %614 = sbr.rel (%p612) target = $region40
        $region39: #{tpu_custom_call.1} parent=31 // pred_region
          %p615 = scmp.lt.s32.totalorder %s35, 1
          %s616 = scalar_select %p615, %s35, 1
          %s617 = scalar_lea.vmem %s3, %s616
        $region40: #{tpu_custom_call.1} parent=31 // pred_fallthru
          _
        // Predicated region
        $region41: #{tpu_custom_call.1} parent=31 // pred_check
          %p618 = pneg %p135
        $region42: #{tpu_custom_call.1} parent=31 // pred_check_branch
          %620 = sbr.rel (%p618) target = $region44
        $region43: #{tpu_custom_call.1} parent=31 // pred_region
          %p621 = scmp.lt.s32.totalorder %s35, 1
          %s622 = scalar_select %p621, %s35, 1
          %p623 = scmp.lt.s32.totalorder %s36, 3
          %s624 = scalar_select %p623, %s36, 3
          %s625 = smul.addr %s624, 4
          %s626 = smul.addr %s622, 16
          %s627 = sadd.s32 %s625, %s626
          %s628 = smul.addr %s627, 4
          %s629 = scalar_lea.vmem %s4, %s628
        $region44: #{tpu_custom_call.1} parent=31 // pred_fallthru
          _
        // Predicated region
        $region45: #{tpu_custom_call.1} parent=31 // pred_check
          %p630 = pneg %p163
        $region46: #{tpu_custom_call.1} parent=31 // pred_check_branch
          %632 = sbr.rel (%p630) target = $region48
        $region47: #{tpu_custom_call.1} parent=31 // pred_region
          %p633 = scmp.lt.s32.totalorder %s35, 1
          %s634 = scalar_select %p633, %s35, 1
          %p635 = scmp.lt.s32.totalorder %s36, 3
          %s636 = scalar_select %p635, %s36, 3
          %s637 = smul.addr %s636, 4
          %s638 = smul.addr %s634, 16
          %s639 = sadd.s32 %s637, %s638
          %s640 = smul.addr %s639, 4
          %s641 = scalar_lea.vmem %s5, %s640
        $region48: #{tpu_custom_call.1} parent=31 // pred_fallthru
          _
        // Predicated region
        $region49: #{tpu_custom_call.1} parent=31 // pred_check
          %p642 = pneg %p191
        $region50: #{tpu_custom_call.1} parent=31 // pred_check_branch
          %644 = sbr.rel (%p642) target = $region52
        $region51: #{tpu_custom_call.1} parent=31 // pred_region
          %p645 = scmp.lt.s32.totalorder %s35, 1
          %s646 = scalar_select %p645, %s35, 1
          %p647 = scmp.lt.s32.totalorder %s36, 3
          %s648 = scalar_select %p647, %s36, 3
          %s649 = smul.addr %s648, 4
          %s650 = smul.addr %s646, 16
          %s651 = sadd.s32 %s649, %s650
          %s652 = smul.addr %s651, 4
          %s653 = scalar_lea.vmem %s6, %s652
        $region52: #{tpu_custom_call.1} parent=31 // pred_fallthru
          _
        // Predicated region
        $region53: #{tpu_custom_call.1} parent=31 // pred_check
          %p654 = pneg %p219
        $region54: #{tpu_custom_call.1} parent=31 // pred_check_branch
          %656 = sbr.rel (%p654) target = $region56
        $region55: #{tpu_custom_call.1} parent=31 // pred_region
          %p657 = scmp.lt.s32.totalorder %s35, 1
          %s658 = scalar_select %p657, %s35, 1
          %p659 = scmp.lt.s32.totalorder %s36, 3
          %s660 = scalar_select %p659, %s36, 3
          %s661 = smul.addr %s658, 4
          %s662 = sadd.s32 %s660, %s661
          %s663 = scalar_lea.vmem %s7, %s662
        $region56: #{tpu_custom_call.1} parent=31 // pred_fallthru
          _
        // Predicated region
        $region57: #{tpu_custom_call.1} parent=31 // pred_check
          %p664 = pneg %p247
        $region58: #{tpu_custom_call.1} parent=31 // pred_check_branch
          %666 = sbr.rel (%p664) target = $region60
        $region59: #{tpu_custom_call.1} parent=31 // pred_region
          %p667 = scmp.lt.s32.totalorder %s35, 1
          %s668 = scalar_select %p667, %s35, 1
          %p669 = scmp.lt.s32.totalorder %s36, 3
          %s670 = scalar_select %p669, %s36, 3
          %s671 = smul.addr %s668, 4
          %s672 = sadd.s32 %s670, %s671
          %s673 = scalar_lea.vmem %s8, %s672
        $region60: #{tpu_custom_call.1} parent=31 // pred_fallthru
          _
        // Predicated region
        $region61: #{tpu_custom_call.1} parent=31 // pred_check
          %p674 = pneg %p275
        $region62: #{tpu_custom_call.1} parent=31 // pred_check_branch
          %676 = sbr.rel (%p674) target = $region64
        $region63: #{tpu_custom_call.1} parent=31 // pred_region
          %p677 = scmp.lt.s32.totalorder %s35, 1
          %s678 = scalar_select %p677, %s35, 1
          %p679 = scmp.lt.s32.totalorder %s36, 3
          %s680 = scalar_select %p679, %s36, 3
          %s681 = smul.addr %s678, 4
          %s682 = sadd.s32 %s680, %s681
          %s683 = scalar_lea.vmem %s9, %s682
        $region64: #{tpu_custom_call.1} parent=31 // pred_fallthru
          _
        // Predicated region
        $region65: #{tpu_custom_call.1} parent=31 // pred_check
          %p684 = pneg %p303
        $region66: #{tpu_custom_call.1} parent=31 // pred_check_branch
          %686 = sbr.rel (%p684) target = $region68
        $region67: #{tpu_custom_call.1} parent=31 // pred_region
          %p687 = scmp.lt.s32.totalorder %s35, 1
          %s688 = scalar_select %p687, %s35, 1
          %p689 = scmp.lt.s32.totalorder %s36, 3
          %s690 = scalar_select %p689, %s36, 3
          %s691 = smul.addr %s688, 4
          %s692 = sadd.s32 %s690, %s691
          %s693 = smul.addr %s692, 4
          %s694 = scalar_lea.vmem %s10, %s693
        $region68: #{tpu_custom_call.1} parent=31 // pred_fallthru
          _
        // Predicated region
        $region69: #{tpu_custom_call.1} parent=31 // pred_check
          %p695 = pneg %p329
        $region70: #{tpu_custom_call.1} parent=31 // pred_check_branch
          %697 = sbr.rel (%p695) target = $region72
        $region71: #{tpu_custom_call.1} parent=31 // pred_region
          %p698 = scmp.lt.s32.totalorder %s35, 1
          %s699 = scalar_select %p698, %s35, 1
          %s700 = scalar_lea.vmem %s11, %s699
        $region72: #{tpu_custom_call.1} parent=31 // pred_fallthru
          _
        // Predicated region
        $region73: #{tpu_custom_call.1} parent=31 // pred_check
          %p701 = pneg %p355
        $region74: #{tpu_custom_call.1} parent=31 // pred_check_branch
          %703 = sbr.rel (%p701) target = $region76
        $region75: #{tpu_custom_call.1} parent=31 // pred_region
          %p704 = scmp.lt.s32.totalorder %s35, 1
          %s705 = scalar_select %p704, %s35, 1
          %s706 = scalar_lea.vmem %s12, %s705
        $region76: #{tpu_custom_call.1} parent=31 // pred_fallthru
          _
        // Predicated region
        $region77: #{tpu_custom_call.1} parent=31 // pred_check
          %p707 = pneg %p381
        $region78: #{tpu_custom_call.1} parent=31 // pred_check_branch
          %709 = sbr.rel (%p707) target = $region80
        $region79: #{tpu_custom_call.1} parent=31 // pred_region
          %p710 = scmp.lt.s32.totalorder %s35, 1
          %s711 = scalar_select %p710, %s35, 1
          %s712 = scalar_lea.vmem %s13, %s711
        $region80: #{tpu_custom_call.1} parent=31 // pred_fallthru
          _
        // Predicated region
        $region81: #{tpu_custom_call.1} parent=31 // pred_check
          %p713 = pneg %p407
        $region82: #{tpu_custom_call.1} parent=31 // pred_check_branch
          %715 = sbr.rel (%p713) target = $region84
        $region83: #{tpu_custom_call.1} parent=31 // pred_region
          %p716 = scmp.lt.s32.totalorder %s35, 1
          %s717 = scalar_select %p716, %s35, 1
          %s718 = smul.addr %s717, 4
          %s719 = smul.addr %s718, 4
          %s720 = scalar_lea.vmem %s14, %s719
        $region84: #{tpu_custom_call.1} parent=31 // pred_fallthru
          _
        // Predicated region
        $region85: #{tpu_custom_call.1} parent=31 // pred_check
          %p721 = pneg %p433
        $region86: #{tpu_custom_call.1} parent=31 // pred_check_branch
          %723 = sbr.rel (%p721) target = $region88
        $region87: #{tpu_custom_call.1} parent=31 // pred_region
          %p724 = scmp.lt.s32.totalorder %s35, 1
          %s725 = scalar_select %p724, %s35, 1
          %s726 = scalar_lea.vmem %s15, %s725
        $region88: #{tpu_custom_call.1} parent=31 // pred_fallthru
          _
        // Predicated region
        $region89: #{tpu_custom_call.1} parent=31 // pred_check
          %p727 = pneg %p459
        $region90: #{tpu_custom_call.1} parent=31 // pred_check_branch
          %729 = sbr.rel (%p727) target = $region92
        $region91: #{tpu_custom_call.1} parent=31 // pred_region
          %p730 = scmp.lt.s32.totalorder %s35, 1
          %s731 = scalar_select %p730, %s35, 1
          %s732 = smul.addr %s731, 16
          %s733 = smul.addr %s732, 4
          %s734 = scalar_lea.vmem %s16, %s733
        $region92: #{tpu_custom_call.1} parent=31 // pred_fallthru
          _
        // Predicated region
        $region93: #{tpu_custom_call.1} parent=31 // pred_check
          %p735 = pneg %p485
        $region94: #{tpu_custom_call.1} parent=31 // pred_check_branch
          %737 = sbr.rel (%p735) target = $region96
        $region95: #{tpu_custom_call.1} parent=31 // pred_region
          %p738 = scmp.lt.s32.totalorder %s35, 1
          %s739 = scalar_select %p738, %s35, 1
          %s740 = scalar_lea.vmem %s17, %s739
        $region96: #{tpu_custom_call.1} parent=31 // pred_fallthru
          _
      $region32: #{tpu_custom_call.1} parent=5 // pred_fallthru
        _
      %p741 = scmp.le.s32.totalorder 1, %s28
      %p742 = scmp.lt.s32.totalorder %s28, 9
      %p743 = pnand %p741, %p742
      %p744 = pneg %p743
      // Predicated region
      $region97: #{tpu_custom_call.1} parent=5 // pred_check
        _
      $region98: #{tpu_custom_call.1} parent=5 // pred_check_branch
        %746 = sbr.rel (%p743) target = $region100
      $region99: #{tpu_custom_call.1} parent=5 // pred_region
        %s747 = ssub.s32 %s28, 1
        %p748 = pneg %p61
        %p749 = pneg %p58
        %p750 = scmp.lt.s32.totalorder %s37, 1
        %s751 = scalar_select %p750, %s37, 1
        %s752 = scalar_lea.vmem %s2, %s751
        %p753 = pneg %p87
        %p754 = pneg %p84
        %p755 = scmp.lt.s32.totalorder %s37, 1
        %s756 = scalar_select %p755, %s37, 1
        %s757 = scalar_lea.vmem %s3, %s756
        %p758 = pneg %p113
        %p759 = pneg %p110
        %p760 = scmp.lt.s32.totalorder %s37, 1
        %s761 = scalar_select %p760, %s37, 1
        %p762 = scmp.lt.s32.totalorder %s38, 3
        %s763 = scalar_select %p762, %s38, 3
        %s764 = smul.addr %s763, 4
        %s765 = smul.addr %s761, 16
        %s766 = sadd.s32 %s764, %s765
        %s767 = smul.addr %s766, 4
        %s768 = scalar_lea.vmem %s4, %s767
        %p769 = pneg %p141
        %p770 = pneg %p138
        %p771 = scmp.lt.s32.totalorder %s37, 1
        %s772 = scalar_select %p771, %s37, 1
        %p773 = scmp.lt.s32.totalorder %s38, 3
        %s774 = scalar_select %p773, %s38, 3
        %s775 = smul.addr %s774, 4
        %s776 = smul.addr %s772, 16
        %s777 = sadd.s32 %s775, %s776
        %s778 = smul.addr %s777, 4
        %s779 = scalar_lea.vmem %s5, %s778
        %p780 = pneg %p169
        %p781 = pneg %p166
        %p782 = scmp.lt.s32.totalorder %s37, 1
        %s783 = scalar_select %p782, %s37, 1
        %p784 = scmp.lt.s32.totalorder %s38, 3
        %s785 = scalar_select %p784, %s38, 3
        %s786 = smul.addr %s785, 4
        %s787 = smul.addr %s783, 16
        %s788 = sadd.s32 %s786, %s787
        %s789 = smul.addr %s788, 4
        %s790 = scalar_lea.vmem %s6, %s789
        %p791 = pneg %p197
        %p792 = pneg %p194
        %p793 = scmp.lt.s32.totalorder %s37, 1
        %s794 = scalar_select %p793, %s37, 1
        %p795 = scmp.lt.s32.totalorder %s38, 3
        %s796 = scalar_select %p795, %s38, 3
        %s797 = smul.addr %s794, 4
        %s798 = sadd.s32 %s796, %s797
        %s799 = scalar_lea.vmem %s7, %s798
        %p800 = pneg %p225
        %p801 = pneg %p222
        %p802 = scmp.lt.s32.totalorder %s37, 1
        %s803 = scalar_select %p802, %s37, 1
        %p804 = scmp.lt.s32.totalorder %s38, 3
        %s805 = scalar_select %p804, %s38, 3
        %s806 = smul.addr %s803, 4
        %s807 = sadd.s32 %s805, %s806
        %s808 = scalar_lea.vmem %s8, %s807
        %p809 = pneg %p253
        %p810 = pneg %p250
        %p811 = scmp.lt.s32.totalorder %s37, 1
        %s812 = scalar_select %p811, %s37, 1
        %p813 = scmp.lt.s32.totalorder %s38, 3
        %s814 = scalar_select %p813, %s38, 3
        %s815 = smul.addr %s812, 4
        %s816 = sadd.s32 %s814, %s815
        %s817 = scalar_lea.vmem %s9, %s816
        %p818 = pneg %p281
        %p819 = pneg %p278
        %p820 = scmp.lt.s32.totalorder %s37, 1
        %s821 = scalar_select %p820, %s37, 1
        %p822 = scmp.lt.s32.totalorder %s38, 3
        %s823 = scalar_select %p822, %s38, 3
        %s824 = smul.addr %s821, 4
        %s825 = sadd.s32 %s823, %s824
        %s826 = smul.addr %s825, 4
        %s827 = scalar_lea.vmem %s10, %s826
        %p828 = pneg %p309
        %p829 = pneg %p306
        %p830 = scmp.lt.s32.totalorder %s37, 1
        %s831 = scalar_select %p830, %s37, 1
        %s832 = scalar_lea.vmem %s11, %s831
        %p833 = pneg %p335
        %p834 = pneg %p332
        %p835 = scmp.lt.s32.totalorder %s37, 1
        %s836 = scalar_select %p835, %s37, 1
        %s837 = scalar_lea.vmem %s12, %s836
        %p838 = pneg %p361
        %p839 = pneg %p358
        %p840 = scmp.lt.s32.totalorder %s37, 1
        %s841 = scalar_select %p840, %s37, 1
        %s842 = scalar_lea.vmem %s13, %s841
        %p843 = pneg %p387
        %p844 = pneg %p384
        %p845 = scmp.lt.s32.totalorder %s37, 1
        %s846 = scalar_select %p845, %s37, 1
        %s847 = smul.addr %s846, 4
        %s848 = smul.addr %s847, 4
        %s849 = scalar_lea.vmem %s14, %s848
        %p850 = pneg %p413
        %p851 = pneg %p410
        %p852 = scmp.lt.s32.totalorder %s37, 1
        %s853 = scalar_select %p852, %s37, 1
        %s854 = scalar_lea.vmem %s15, %s853
        %p855 = pneg %p439
        %p856 = pneg %p436
        %p857 = scmp.lt.s32.totalorder %s37, 1
        %s858 = scalar_select %p857, %s37, 1
        %s859 = smul.addr %s858, 16
        %s860 = smul.addr %s859, 4
        %s861 = scalar_lea.vmem %s16, %s860
        %p862 = pneg %p465
        %p863 = pneg %p462
        %p864 = scmp.lt.s32.totalorder %s37, 1
        %s865 = scalar_select %p864, %s37, 1
        %s866 = scalar_lea.vmem %s17, %s865
        %p867 = pneg %p491
        %p868 = pneg %p488
        %p869 = pneg %p512
        %p870 = pneg %p509
        %p871 = pneg %p533
        %p872 = pneg %p530
        %p873 = pneg %p554
        %p874 = pneg %p551
        %p875 = pneg %p575
        %p876 = pneg %p572
        %p877 = scmp.lt.s32.totalorder %s37, 1
        %s878 = scalar_select %p877, %s37, 1
        %s879 = scalar_lea.vmem %s2, %s878
        %p880 = scmp.lt.s32.totalorder %s37, 1
        %s881 = scalar_select %p880, %s37, 1
        %s882 = scalar_lea.vmem %s3, %s881
        %p883 = scmp.lt.s32.totalorder %s37, 1
        %s884 = scalar_select %p883, %s37, 1
        %p885 = scmp.lt.s32.totalorder %s38, 3
        %s886 = scalar_select %p885, %s38, 3
        %s887 = smul.addr %s886, 4
        %s888 = smul.addr %s884, 16
        %s889 = sadd.s32 %s887, %s888
        %s890 = smul.addr %s889, 4
        %s891 = scalar_lea.vmem %s4, %s890
        %p892 = scmp.lt.s32.totalorder %s37, 1
        %s893 = scalar_select %p892, %s37, 1
        %p894 = scmp.lt.s32.totalorder %s38, 3
        %s895 = scalar_select %p894, %s38, 3
        %s896 = smul.addr %s895, 4
        %s897 = smul.addr %s893, 16
        %s898 = sadd.s32 %s896, %s897
        %s899 = smul.addr %s898, 4
        %s900 = scalar_lea.vmem %s5, %s899
        %p901 = scmp.lt.s32.totalorder %s37, 1
        %s902 = scalar_select %p901, %s37, 1
        %p903 = scmp.lt.s32.totalorder %s38, 3
        %s904 = scalar_select %p903, %s38, 3
        %s905 = smul.addr %s904, 4
        %s906 = smul.addr %s902, 16
        %s907 = sadd.s32 %s905, %s906
        %s908 = smul.addr %s907, 4
        %s909 = scalar_lea.vmem %s6, %s908
        %p910 = scmp.lt.s32.totalorder %s37, 1
        %s911 = scalar_select %p910, %s37, 1
        %p912 = scmp.lt.s32.totalorder %s38, 3
        %s913 = scalar_select %p912, %s38, 3
        %s914 = smul.addr %s911, 4
        %s915 = sadd.s32 %s913, %s914
        %s916 = scalar_lea.vmem %s7, %s915
        %p917 = scmp.lt.s32.totalorder %s37, 1
        %s918 = scalar_select %p917, %s37, 1
        %p919 = scmp.lt.s32.totalorder %s38, 3
        %s920 = scalar_select %p919, %s38, 3
        %s921 = smul.addr %s918, 4
        %s922 = sadd.s32 %s920, %s921
        %s923 = scalar_lea.vmem %s8, %s922
        %p924 = scmp.lt.s32.totalorder %s37, 1
        %s925 = scalar_select %p924, %s37, 1
        %p926 = scmp.lt.s32.totalorder %s38, 3
        %s927 = scalar_select %p926, %s38, 3
        %s928 = smul.addr %s925, 4
        %s929 = sadd.s32 %s927, %s928
        %s930 = scalar_lea.vmem %s9, %s929
        %p931 = scmp.lt.s32.totalorder %s37, 1
        %s932 = scalar_select %p931, %s37, 1
        %p933 = scmp.lt.s32.totalorder %s38, 3
        %s934 = scalar_select %p933, %s38, 3
        %s935 = smul.addr %s932, 4
        %s936 = sadd.s32 %s934, %s935
        %s937 = smul.addr %s936, 4
        %s938 = scalar_lea.vmem %s10, %s937
        %p939 = scmp.lt.s32.totalorder %s37, 1
        %s940 = scalar_select %p939, %s37, 1
        %s941 = scalar_lea.vmem %s11, %s940
        %p942 = scmp.lt.s32.totalorder %s37, 1
        %s943 = scalar_select %p942, %s37, 1
        %s944 = scalar_lea.vmem %s12, %s943
        %p945 = scmp.lt.s32.totalorder %s37, 1
        %s946 = scalar_select %p945, %s37, 1
        %s947 = scalar_lea.vmem %s13, %s946
        %p948 = scmp.lt.s32.totalorder %s37, 1
        %s949 = scalar_select %p948, %s37, 1
        %s950 = smul.addr %s949, 4
        %s951 = smul.addr %s950, 4
        %s952 = scalar_lea.vmem %s14, %s951
        %p953 = scmp.lt.s32.totalorder %s37, 1
        %s954 = scalar_select %p953, %s37, 1
        %s955 = scalar_lea.vmem %s15, %s954
        %p956 = scmp.lt.s32.totalorder %s37, 1
        %s957 = scalar_select %p956, %s37, 1
        %s958 = smul.addr %s957, 16
        %s959 = smul.addr %s958, 4
        %s960 = scalar_lea.vmem %s16, %s959
        %p961 = scmp.lt.s32.totalorder %s37, 1
        %s962 = scalar_select %p961, %s37, 1
        %s963 = scalar_lea.vmem %s17, %s962
        %p965 = scmp.eq.s32.totalorder %s37, 0
        %p966 = scmp.eq.s32.totalorder %s38, 0
        %p967 = pnand %p965, %p966
        %p968 = pneg %p967
        // Predicated region
        $region101: #{tpu_custom_call.1} parent=99 // pred_check
          _
        $region102: #{tpu_custom_call.1} parent=99 // pred_check_branch
          %970 = sbr.rel (%p967) target = $region104
        $region103: #{tpu_custom_call.1} parent=99 // pred_region
          %p972 = scmp.lt.u32.totalorder 16, 8
          %p973 = pneg %p972
          // Predicated region
          $region105: #{tpu_custom_call.1} parent=103 // pred_check
            _
          $region106: #{tpu_custom_call.1} parent=103 // pred_check_branch
            %975 = sbr.rel (%p972) target = $region108
          $region107: #{tpu_custom_call.1} parent=103 // pred_region
            %s990 = sand.u32 16, 7
            %p991 = scmp.eq.s32.totalorder %s990, 0
            // Predicated region
            $region120: #{tpu_custom_call.1} parent=107 // pred_check
              %p992 = pneg %p991
            $region121: #{tpu_custom_call.1} parent=107 // pred_check_branch
              %994 = sbr.rel (%p992) target = $region123
            $region122: #{tpu_custom_call.1} parent=107 // pred_region
              loop: start=0, step=1, limit=1
              $region124: #{tpu_custom_call.1} parent=122 // loop_pre_header
                _
              $region125: #{tpu_custom_call.1} parent=122 // loop_header
                %s996 = sphi 0, %s1000
                %p997 = scmp.ge.s32.totalorder %s996, 1
                %s1001 = sphi %s0, %s0
                %s1002 = sphi [#allocation2], [#allocation2]
              $region126: #{tpu_custom_call.1} parent=122 // loop_header_branch
                %999 = sbr.rel (%p997) target = $region130
              $region127: #{tpu_custom_call.1} parent=122 // loop_body
                %v1003 = vld [vmem:[%s1001] sm:$0xff]
                %1004 = vst [vmem:[%s1002] sm:$0xff] %v1003
                %v1005 = vld [vmem:[%s1001 + $0x8] sm:$0xff]
                %1006 = vst [vmem:[%s1002 + $0x8] sm:$0xff] %v1005
              $region128: #{tpu_custom_call.1} parent=122 // loop_footer
                %s1000 = sadd.s32 1, %s996
              $region129: #{tpu_custom_call.1} parent=122 // loop_footer_branch
                %995 = sbr.rel target = $region125
              $region130: #{tpu_custom_call.1} parent=122 // loop_exit
                _
            $region123: #{tpu_custom_call.1} parent=107 // pred_fallthru
              _
            %p1007 = pneg %p991
            // Predicated region
            $region131: #{tpu_custom_call.1} parent=107 // pred_check
              _
            $region132: #{tpu_custom_call.1} parent=107 // pred_check_branch
              %1009 = sbr.rel (%p991) target = $region134
            $region133: #{tpu_custom_call.1} parent=107 // pred_region
              %s1010 = sand.u32 16, 7
            $region134: #{tpu_custom_call.1} parent=107 // pred_fallthru
              _
          $region108: #{tpu_custom_call.1} parent=103 // pred_fallthru
            _
          // Predicated region
          $region109: #{tpu_custom_call.1} parent=103 // pred_check
            %p976 = pneg %p972
          $region110: #{tpu_custom_call.1} parent=103 // pred_check_branch
            %978 = sbr.rel (%p976) target = $region112
          $region111: #{tpu_custom_call.1} parent=103 // pred_region
            %s979 = sshllo.u32 0, 16
            loop: start=0, step=1, limit=1
            $region113: #{tpu_custom_call.1} parent=111 // loop_pre_header
              _
            $region114: #{tpu_custom_call.1} parent=111 // loop_header
              %s981 = sphi 0, %s985
              %p982 = scmp.ge.s32.totalorder %s981, 1
              %s986 = sphi %s0, %s0
              %s987 = sphi [#allocation2], [#allocation2]
            $region115: #{tpu_custom_call.1} parent=111 // loop_header_branch
              %984 = sbr.rel (%p982) target = $region119
            $region116: #{tpu_custom_call.1} parent=111 // loop_body
              %v988 = vld [vmem:[%s986] sm:%s979]
              %989 = vst [vmem:[%s987] sm:%s979] %v988
            $region117: #{tpu_custom_call.1} parent=111 // loop_footer
              %s985 = sadd.s32 1, %s981
            $region118: #{tpu_custom_call.1} parent=111 // loop_footer_branch
              %980 = sbr.rel target = $region114
            $region119: #{tpu_custom_call.1} parent=111 // loop_exit
              _
          $region112: #{tpu_custom_call.1} parent=103 // pred_fallthru
            _
          // Predicated region
          $region135: #{tpu_custom_call.1} parent=103 // pred_check
            _
          $region136: #{tpu_custom_call.1} parent=103 // pred_check_branch
            %1013 = sbr.rel (0) target = $region138
          $region137: #{tpu_custom_call.1} parent=103 // pred_region
            %1014 = vsyncadd [#allocation4], 256
          $region138: #{tpu_custom_call.1} parent=103 // pred_fallthru
            _
          %s1015 = smul.u32 16, 1
          %s1016 = sshll.u32 %s1015, 4
          %1017 = dma.done [#allocation4], %s1016
        $region104: #{tpu_custom_call.1} parent=99 // pred_fallthru
          _
        // Predicated region
        $region139: #{tpu_custom_call.1} parent=99 // pred_check
          %p1018 = pneg %p966
        $region140: #{tpu_custom_call.1} parent=99 // pred_check_branch
          %1020 = sbr.rel (%p1018) target = $region142
        $region141: #{tpu_custom_call.1} parent=99 // pred_region
          %v1021 = vld [vmem:[#allocation2] sm:$0xff]
          %v1022 = vld [vmem:[#allocation2 + $0x8] sm:$0xff]
          %v1023 = vld [vmem:[%s879] sm:$0x1]
          %v1024 = vld [vmem:[%s882] sm:$0x1]
          %vm1025 = vcmask 261120
          %v1026 = vsel %vm1025, %v1021, 0.0
          %1027 = vadd.xlane.f32.xlu0 %v1026
          %v1028 = vpop.xlane.xlu0 %1027
          %v1029 = vsel %vm1025, %v1022, 0.0
          %1030 = vadd.xlane.f32.xlu0 %v1029
          %v1031 = vpop.xlane.xlu0 %1030
          %v1032 = vrcp.pop 32.0
          %v1033 = vmul.f32 %v1028, %v1032
          %v1034 = vmul.f32 %v1031, %v1032
          %v1035 = vsub.f32 %v1021, %v1033
          %v1036 = vsub.f32 %v1022, %v1034
          %v1037 = vmul.f32 %v1035, %v1035
          %v1038 = vmul.f32 %v1036, %v1036
          %v1039 = vsel %vm1025, %v1037, 0.0
          %1040 = vadd.xlane.f32.xlu0 %v1039
          %v1041 = vpop.xlane.xlu0 %1040
          %v1042 = vsel %vm1025, %v1038, 0.0
          %1043 = vadd.xlane.f32.xlu0 %v1042
          %v1044 = vpop.xlane.xlu0 %1043
          %v1045 = vmul.f32 %v1041, %v1032
          %v1046 = vmul.f32 %v1044, %v1032
          %v1047 = vadd.f32 %v1045, 1e-05
          %v1048 = vadd.f32 %v1046, 1e-05
          %v1049 = vrsqrt.pop %v1047
          %v1050 = vrsqrt.pop %v1048
          %v1051 = vmul.f32 %v1035, %v1049
          %v1052 = vmul.f32 %v1036, %v1050
          %v1054 = vlaneseq
          %v1055 = vshrl.u32 %v1054, 7
          %v1056 = vsub.s32 0, %v1055
          %v1057 = vrot.slane %v1023, %v1056
          %v1059 = vmul.f32 %v1051, %v1057
          %v1060 = vmul.f32 %v1052, %v1057
          %v1062 = vlaneseq
          %v1063 = vshrl.u32 %v1062, 7
          %v1064 = vsub.s32 0, %v1063
          %v1065 = vrot.slane %v1024, %v1064
          %v1067 = vadd.f32 %v1059, %v1065
          %v1068 = vadd.f32 %v1060, %v1065
          %1069 = vst.msk [vmem:[#allocation3] sm:$0xff] %vm1025, %v1067
          %1070 = vst.msk [vmem:[#allocation3 + $0x8] sm:$0xff] %vm1025, %v1068
        $region142: #{tpu_custom_call.1} parent=99 // pred_fallthru
          _
        %v1071 = vld [vmem:[#allocation3] sm:$0xff]
        %v1072 = vld [vmem:[#allocation3 + $0x8] sm:$0xff]
        %v1073 = vpack.c.bf16 %v1072, %v1071
        %v1074 = vld [vmem:[%s891] sm:$0xf]
        %v1075 = vld [vmem:[%s891 + $0x4] sm:$0xf]
        %v1076 = vld [vmem:[%s891 + $0x8] sm:$0xf]
        %v1077 = vld [vmem:[%s891 + $0xc] sm:$0xf]
        %v1078 = vld [vmem:[%s916] sm:$0x1]
        %v1080 = vlaneseq
        %v1081 = vshrl.u32 %v1080, 7
        %v1082 = vsub.s32 0, %v1081
        %v1083 = vrot.slane %v1078, %v1082
        %v1089 = vunpack.c.l.b16 %v1074
        %v1090 = vunpack.c.l.b16 %v1075
        %v1091 = vunpack.c.l.b16 %v1076
        %v1092 = vunpack.c.l.b16 %v1077
        %v1093 = vpack.c.b16 %v1090, %v1089
        %v1094 = vpack.c.b16 %v1092, %v1091
        %vm1097 = vcmask 261120
        %v1099 = vsel %vm1097, %v1073, 0
        %1101 = vmatprep.subr.bf16.mxu0 0
        %1102 = vmatpush1.bf16.msra.mxu0 %v1093
        %1103 = vmatprep.subr.bf16.mxu0 0
        %1104 = vmatpush1.bf16.msra.mxu0 %v1094
        %1105 = vmatprep.subr.bf16.mxu0 0
        %1106 = vmatpush1.bf16.msra.mxu0 0
        %1107 = vmatprep.subr.bf16.mxu0 0
        %1108 = vmatpush1.bf16.msra.mxu0 0
        %1109 = vmatprep.subr.bf16.mxu0 0
        %1110 = vmatpush1.bf16.msra.mxu0 0
        %1111 = vmatprep.subr.bf16.mxu0 0
        %1112 = vmatpush1.bf16.msra.mxu0 0
        %1113 = vmatprep.subr.bf16.mxu0 0
        %1114 = vmatpush1.bf16.msra.mxu0 0
        %1115 = vmatprep.subr.bf16.mxu0 0
        %1116 = vmatpush1.bf16.msra.mxu0 0
        %1117 = vmatprep.subr.bf16.mxu0 0
        %1118 = vmatpush1.bf16.msra.mxu0 0
        %1119 = vmatprep.subr.bf16.mxu0 0
        %1120 = vmatpush1.bf16.msra.mxu0 0
        %1121 = vmatprep.subr.bf16.mxu0 0
        %1122 = vmatpush1.bf16.msra.mxu0 0
        %1123 = vmatprep.subr.bf16.mxu0 0
        %1124 = vmatpush1.bf16.msra.mxu0 0
        %1125 = vmatprep.subr.bf16.mxu0 0
        %1126 = vmatpush1.bf16.msra.mxu0 0
        %1127 = vmatprep.subr.bf16.mxu0 0
        %1128 = vmatpush1.bf16.msra.mxu0 0
        %1129 = vmatprep.subr.bf16.mxu0 0
        %1130 = vmatpush1.bf16.msra.mxu0 0
        %1131 = vmatprep.subr.bf16.mxu0 0
        %1132 = vmatpush1.bf16.msra.mxu0 0
        %1133 = vmatprep.mubr.bf16.mxu0 0
        %1134 = vmatmul.mubr.bf16.gmra.mrb[0].mxu0 %v1099
        %v1135 = vpop.f32.mrb[0].mxu0
        %v1136 = vadd.f32 %v1083, %v1135
        %v1137 = vpop.f32.mrb[0].mxu0
        %v1138 = vpop.f32.mrb[0].mxu0
        %v1139 = vadd.f32 %v1083, %v1138
        %v1140 = vpop.f32.mrb[0].mxu0
        %1141 = vdwg.mxu0
        %v1142 = vld [vmem:[%s900] sm:$0xf]
        %v1143 = vld [vmem:[%s900 + $0x4] sm:$0xf]
        %v1144 = vld [vmem:[%s900 + $0x8] sm:$0xf]
        %v1145 = vld [vmem:[%s900 + $0xc] sm:$0xf]
        %v1146 = vld [vmem:[%s923] sm:$0x1]
        %v1148 = vlaneseq
        %v1149 = vshrl.u32 %v1148, 7
        %v1150 = vsub.s32 0, %v1149
        %v1151 = vrot.slane %v1146, %v1150
        %v1157 = vunpack.c.l.b16 %v1142
        %v1158 = vunpack.c.l.b16 %v1143
        %v1159 = vunpack.c.l.b16 %v1144
        %v1160 = vunpack.c.l.b16 %v1145
        %v1161 = vpack.c.b16 %v1158, %v1157
        %v1162 = vpack.c.b16 %v1160, %v1159
        %1165 = vmatprep.subr.bf16.mxu0 0
        %1166 = vmatpush1.bf16.msra.mxu0 %v1161
        %1167 = vmatprep.subr.bf16.mxu0 0
        %1168 = vmatpush1.bf16.msra.mxu0 %v1162
        %1169 = vmatprep.subr.bf16.mxu0 0
        %1170 = vmatpush1.bf16.msra.mxu0 0
        %1171 = vmatprep.subr.bf16.mxu0 0
        %1172 = vmatpush1.bf16.msra.mxu0 0
        %1173 = vmatprep.subr.bf16.mxu0 0
        %1174 = vmatpush1.bf16.msra.mxu0 0
        %1175 = vmatprep.subr.bf16.mxu0 0
        %1176 = vmatpush1.bf16.msra.mxu0 0
        %1177 = vmatprep.subr.bf16.mxu0 0
        %1178 = vmatpush1.bf16.msra.mxu0 0
        %1179 = vmatprep.subr.bf16.mxu0 0
        %1180 = vmatpush1.bf16.msra.mxu0 0
        %1181 = vmatprep.subr.bf16.mxu0 0
        %1182 = vmatpush1.bf16.msra.mxu0 0
        %1183 = vmatprep.subr.bf16.mxu0 0
        %1184 = vmatpush1.bf16.msra.mxu0 0
        %1185 = vmatprep.subr.bf16.mxu0 0
        %1186 = vmatpush1.bf16.msra.mxu0 0
        %1187 = vmatprep.subr.bf16.mxu0 0
        %1188 = vmatpush1.bf16.msra.mxu0 0
        %1189 = vmatprep.subr.bf16.mxu0 0
        %1190 = vmatpush1.bf16.msra.mxu0 0
        %1191 = vmatprep.subr.bf16.mxu0 0
        %1192 = vmatpush1.bf16.msra.mxu0 0
        %1193 = vmatprep.subr.bf16.mxu0 0
        %1194 = vmatpush1.bf16.msra.mxu0 0
        %1195 = vmatprep.subr.bf16.mxu0 0
        %1196 = vmatpush1.bf16.msra.mxu0 0
        %1197 = vmatprep.mubr.bf16.mxu0 0
        %1198 = vmatmul.mubr.bf16.gmra.mrb[0].mxu0 %v1099
        %v1199 = vpop.f32.mrb[0].mxu0
        %v1200 = vadd.f32 %v1151, %v1199
        %v1201 = vpop.f32.mrb[0].mxu0
        %v1202 = vpop.f32.mrb[0].mxu0
        %v1203 = vadd.f32 %v1151, %v1202
        %v1204 = vpop.f32.mrb[0].mxu0
        %1205 = vdwg.mxu0
        %v1206 = vld [vmem:[%s909] sm:$0xf]
        %v1207 = vld [vmem:[%s909 + $0x4] sm:$0xf]
        %v1208 = vld [vmem:[%s909 + $0x8] sm:$0xf]
        %v1209 = vld [vmem:[%s909 + $0xc] sm:$0xf]
        %v1210 = vld [vmem:[%s930] sm:$0x1]
        %v1212 = vlaneseq
        %v1213 = vshrl.u32 %v1212, 7
        %v1214 = vsub.s32 0, %v1213
        %v1215 = vrot.slane %v1210, %v1214
        %v1221 = vunpack.c.l.b16 %v1206
        %v1222 = vunpack.c.l.b16 %v1207
        %v1223 = vunpack.c.l.b16 %v1208
        %v1224 = vunpack.c.l.b16 %v1209
        %v1225 = vpack.c.b16 %v1222, %v1221
        %v1226 = vpack.c.b16 %v1224, %v1223
        %1229 = vmatprep.subr.bf16.mxu0 0
        %1230 = vmatpush1.bf16.msra.mxu0 %v1225
        %1231 = vmatprep.subr.bf16.mxu0 0
        %1232 = vmatpush1.bf16.msra.mxu0 %v1226
        %1233 = vmatprep.subr.bf16.mxu0 0
        %1234 = vmatpush1.bf16.msra.mxu0 0
        %1235 = vmatprep.subr.bf16.mxu0 0
        %1236 = vmatpush1.bf16.msra.mxu0 0
        %1237 = vmatprep.subr.bf16.mxu0 0
        %1238 = vmatpush1.bf16.msra.mxu0 0
        %1239 = vmatprep.subr.bf16.mxu0 0
        %1240 = vmatpush1.bf16.msra.mxu0 0
        %1241 = vmatprep.subr.bf16.mxu0 0
        %1242 = vmatpush1.bf16.msra.mxu0 0
        %1243 = vmatprep.subr.bf16.mxu0 0
        %1244 = vmatpush1.bf16.msra.mxu0 0
        %1245 = vmatprep.subr.bf16.mxu0 0
        %1246 = vmatpush1.bf16.msra.mxu0 0
        %1247 = vmatprep.subr.bf16.mxu0 0
        %1248 = vmatpush1.bf16.msra.mxu0 0
        %1249 = vmatprep.subr.bf16.mxu0 0
        %1250 = vmatpush1.bf16.msra.mxu0 0
        %1251 = vmatprep.subr.bf16.mxu0 0
        %1252 = vmatpush1.bf16.msra.mxu0 0
        %1253 = vmatprep.subr.bf16.mxu0 0
        %1254 = vmatpush1.bf16.msra.mxu0 0
        %1255 = vmatprep.subr.bf16.mxu0 0
        %1256 = vmatpush1.bf16.msra.mxu0 0
        %1257 = vmatprep.subr.bf16.mxu0 0
        %1258 = vmatpush1.bf16.msra.mxu0 0
        %1259 = vmatprep.subr.bf16.mxu0 0
        %1260 = vmatpush1.bf16.msra.mxu0 0
        %1261 = vmatprep.mubr.bf16.mxu0 0
        %1262 = vmatmul.mubr.bf16.gmra.mrb[0].mxu0 %v1099
        %v1263 = vpop.f32.mrb[0].mxu0
        %v1264 = vadd.f32 %v1215, %v1263
        %v1265 = vpop.f32.mrb[0].mxu0
        %v1266 = vpop.f32.mrb[0].mxu0
        %v1267 = vadd.f32 %v1215, %v1266
        %v1268 = vpop.f32.mrb[0].mxu0
        %1269 = vdwg.mxu0
        %v1270 = vlaneseq
        %v1271 = vshrl.u32 %v1270, 7
        %v1272 = vlaneseq
        %v1273 = vand.u32 %v1272, 127
        %vm1274 = vcmp.le.s32.totalorder %v1273, %v1271
        %v1275 = vsel %vm1274, 0.0, -1e+30
        %v1276 = vpack.c.bf16 %v1136, %v1136
        %v1277 = vpack.c.bf16 %v1139, %v1139
        %v1278 = vpack.c.bf16 %v1200, %v1200
        %v1279 = vpack.c.bf16 %v1203, %v1203
        %vm1280 = vcmask 64512
        %v1282 = vsel %vm1280, %v1276, 0
        %v1285 = vsel %vm1280, %v1278, 0
        %1287 = vmatprep.subr.bf16.mxu0 0
        %1288 = vmatpush1.bf16.xpose.msra.mxu0 %v1285
        %1289 = vmatprep.subr.bf16.mxu0 0
        %1290 = vmatpush1.bf16.xpose.msra.mxu0 0
        %1291 = vmatprep.subr.bf16.mxu0 0
        %1292 = vmatpush1.bf16.xpose.msra.mxu0 0
        %1293 = vmatprep.subr.bf16.mxu0 0
        %1294 = vmatpush1.bf16.xpose.msra.mxu0 0
        %1295 = vmatprep.subr.bf16.mxu0 0
        %1296 = vmatpush1.bf16.xpose.msra.mxu0 0
        %1297 = vmatprep.subr.bf16.mxu0 0
        %1298 = vmatpush1.bf16.xpose.msra.mxu0 0
        %1299 = vmatprep.subr.bf16.mxu0 0
        %1300 = vmatpush1.bf16.xpose.msra.mxu0 0
        %1301 = vmatprep.subr.bf16.mxu0 0
        %1302 = vmatpush1.bf16.xpose.msra.mxu0 0
        %1303 = vmatprep.subr.bf16.mxu0 0
        %1304 = vmatpush1.bf16.xpose.msra.mxu0 0
        %1305 = vmatprep.subr.bf16.mxu0 0
        %1306 = vmatpush1.bf16.xpose.msra.mxu0 0
        %1307 = vmatprep.subr.bf16.mxu0 0
        %1308 = vmatpush1.bf16.xpose.msra.mxu0 0
        %1309 = vmatprep.subr.bf16.mxu0 0
        %1310 = vmatpush1.bf16.xpose.msra.mxu0 0
        %1311 = vmatprep.subr.bf16.mxu0 0
        %1312 = vmatpush1.bf16.xpose.msra.mxu0 0
        %1313 = vmatprep.subr.bf16.mxu0 0
        %1314 = vmatpush1.bf16.xpose.msra.mxu0 0
        %1315 = vmatprep.subr.bf16.mxu0 0
        %1316 = vmatpush1.bf16.xpose.msra.mxu0 0
        %1317 = vmatprep.subr.bf16.mxu0 0
        %1318 = vmatpush1.bf16.xpose.msra.mxu0 0
        %1319 = vmatprep.mubr.bf16.mxu0 0
        %1320 = vmatmul.mubr.bf16.gmra.mrb[0].mxu0 %v1282
        %v1321 = vpop.f32.mrb[0].mxu0
        %v1322 = vadd.f32 %v1275, %v1321
        %v1323 = vpop.f32.mrb[0].mxu0
        %v1324 = vpop.f32.mrb[0].mxu0
        %v1325 = vpop.f32.mrb[0].mxu0
        %1326 = vdwg.mxu0
        %v1328 = vsel %vm1280, %v1277, 0
        %v1331 = vsel %vm1280, %v1279, 0
        %1333 = vmatprep.subr.bf16.mxu0 0
        %1334 = vmatpush1.bf16.xpose.msra.mxu0 %v1331
        %1335 = vmatprep.subr.bf16.mxu0 0
        %1336 = vmatpush1.bf16.xpose.msra.mxu0 0
        %1337 = vmatprep.subr.bf16.mxu0 0
        %1338 = vmatpush1.bf16.xpose.msra.mxu0 0
        %1339 = vmatprep.subr.bf16.mxu0 0
        %1340 = vmatpush1.bf16.xpose.msra.mxu0 0
        %1341 = vmatprep.subr.bf16.mxu0 0
        %1342 = vmatpush1.bf16.xpose.msra.mxu0 0
        %1343 = vmatprep.subr.bf16.mxu0 0
        %1344 = vmatpush1.bf16.xpose.msra.mxu0 0
        %1345 = vmatprep.subr.bf16.mxu0 0
        %1346 = vmatpush1.bf16.xpose.msra.mxu0 0
        %1347 = vmatprep.subr.bf16.mxu0 0
        %1348 = vmatpush1.bf16.xpose.msra.mxu0 0
        %1349 = vmatprep.subr.bf16.mxu0 0
        %1350 = vmatpush1.bf16.xpose.msra.mxu0 0
        %1351 = vmatprep.subr.bf16.mxu0 0
        %1352 = vmatpush1.bf16.xpose.msra.mxu0 0
        %1353 = vmatprep.subr.bf16.mxu0 0
        %1354 = vmatpush1.bf16.xpose.msra.mxu0 0
        %1355 = vmatprep.subr.bf16.mxu0 0
        %1356 = vmatpush1.bf16.xpose.msra.mxu0 0
        %1357 = vmatprep.subr.bf16.mxu0 0
        %1358 = vmatpush1.bf16.xpose.msra.mxu0 0
        %1359 = vmatprep.subr.bf16.mxu0 0
        %1360 = vmatpush1.bf16.xpose.msra.mxu0 0
        %1361 = vmatprep.subr.bf16.mxu0 0
        %1362 = vmatpush1.bf16.xpose.msra.mxu0 0
        %1363 = vmatprep.subr.bf16.mxu0 0
        %1364 = vmatpush1.bf16.xpose.msra.mxu0 0
        %1365 = vmatprep.mubr.bf16.mxu0 0
        %1366 = vmatmul.mubr.bf16.gmra.mrb[0].mxu0 %v1328
        %v1367 = vpop.f32.mrb[0].mxu0
        %v1368 = vadd.f32 %v1275, %v1367
        %v1369 = vpop.f32.mrb[0].mxu0
        %v1370 = vpop.f32.mrb[0].mxu0
        %v1371 = vpop.f32.mrb[0].mxu0
        %1372 = vdwg.mxu0
        %v1373 = vsel %vm1280, %v1322, -inf
        %1374 = vmax.xlane.f32.xlu0 %v1373
        %v1375 = vpop.xlane.xlu0 %1374
        %v1376 = vsel %vm1280, %v1368, -inf
        %1377 = vmax.xlane.f32.xlu0 %v1376
        %v1378 = vpop.xlane.xlu0 %1377
        %v1379 = vsub.f32 %v1322, %v1375
        %v1380 = vsub.f32 %v1368, %v1378
        %v1381 = vmul.f32 %v1379, 1.442695
        %v1382 = vpow.pop %v1381
        %v1383 = vmul.f32 %v1380, 1.442695
        %v1384 = vpow.pop %v1383
        %v1385 = vsel %vm1280, %v1382, 0.0
        %1386 = vadd.xlane.f32.xlu0 %v1385
        %v1387 = vpop.xlane.xlu0 %1386
        %v1388 = vsel %vm1280, %v1384, 0.0
        %1389 = vadd.xlane.f32.xlu0 %v1388
        %v1390 = vpop.xlane.xlu0 %1389
        %v1391 = vrcp.pop %v1387
        %v1392 = vmul.f32 %v1382, %v1391
        %v1393 = vrcp.pop %v1390
        %v1394 = vmul.f32 %v1384, %v1393
        %v1395 = vpack.c.bf16 %v1392, %v1392
        %v1396 = vpack.c.bf16 %v1394, %v1394
        %v1397 = vpack.c.bf16 %v1264, %v1264
        %v1398 = vpack.c.bf16 %v1267, %v1267
        %v1400 = vsel %vm1280, %v1395, 0
        %vm1402 = vcmask 1043456
        %v1404 = vsel %vm1402, %v1397, 0
        %1406 = vmatprep.subr.bf16.mxu0 0
        %1407 = vmatpush1.bf16.msra.mxu0 %v1404
        %1408 = vmatprep.subr.bf16.mxu0 0
        %1409 = vmatpush1.bf16.msra.mxu0 0
        %1410 = vmatprep.subr.bf16.mxu0 0
        %1411 = vmatpush1.bf16.msra.mxu0 0
        %1412 = vmatprep.subr.bf16.mxu0 0
        %1413 = vmatpush1.bf16.msra.mxu0 0
        %1414 = vmatprep.subr.bf16.mxu0 0
        %1415 = vmatpush1.bf16.msra.mxu0 0
        %1416 = vmatprep.subr.bf16.mxu0 0
        %1417 = vmatpush1.bf16.msra.mxu0 0
        %1418 = vmatprep.subr.bf16.mxu0 0
        %1419 = vmatpush1.bf16.msra.mxu0 0
        %1420 = vmatprep.subr.bf16.mxu0 0
        %1421 = vmatpush1.bf16.msra.mxu0 0
        %1422 = vmatprep.subr.bf16.mxu0 0
        %1423 = vmatpush1.bf16.msra.mxu0 0
        %1424 = vmatprep.subr.bf16.mxu0 0
        %1425 = vmatpush1.bf16.msra.mxu0 0
        %1426 = vmatprep.subr.bf16.mxu0 0
        %1427 = vmatpush1.bf16.msra.mxu0 0
        %1428 = vmatprep.subr.bf16.mxu0 0
        %1429 = vmatpush1.bf16.msra.mxu0 0
        %1430 = vmatprep.subr.bf16.mxu0 0
        %1431 = vmatpush1.bf16.msra.mxu0 0
        %1432 = vmatprep.subr.bf16.mxu0 0
        %1433 = vmatpush1.bf16.msra.mxu0 0
        %1434 = vmatprep.subr.bf16.mxu0 0
        %1435 = vmatpush1.bf16.msra.mxu0 0
        %1436 = vmatprep.subr.bf16.mxu0 0
        %1437 = vmatpush1.bf16.msra.mxu0 0
        %1438 = vmatprep.mubr.bf16.mxu0 0
        %1439 = vmatmul.mubr.bf16.gmra.mrb[0].mxu0 %v1400
        %v1440 = vpop.f32.mrb[0].mxu0
        %v1441 = vadd.f32 0.0, %v1440
        %v1442 = vpop.f32.mrb[0].mxu0
        %v1443 = vpop.f32.mrb[0].mxu0
        %v1444 = vpop.f32.mrb[0].mxu0
        %1445 = vdwg.mxu0
        %v1447 = vsel %vm1280, %v1396, 0
        %v1450 = vsel %vm1402, %v1398, 0
        %1452 = vmatprep.subr.bf16.mxu0 0
        %1453 = vmatpush1.bf16.msra.mxu0 %v1450
        %1454 = vmatprep.subr.bf16.mxu0 0
        %1455 = vmatpush1.bf16.msra.mxu0 0
        %1456 = vmatprep.subr.bf16.mxu0 0
        %1457 = vmatpush1.bf16.msra.mxu0 0
        %1458 = vmatprep.subr.bf16.mxu0 0
        %1459 = vmatpush1.bf16.msra.mxu0 0
        %1460 = vmatprep.subr.bf16.mxu0 0
        %1461 = vmatpush1.bf16.msra.mxu0 0
        %1462 = vmatprep.subr.bf16.mxu0 0
        %1463 = vmatpush1.bf16.msra.mxu0 0
        %1464 = vmatprep.subr.bf16.mxu0 0
        %1465 = vmatpush1.bf16.msra.mxu0 0
        %1466 = vmatprep.subr.bf16.mxu0 0
        %1467 = vmatpush1.bf16.msra.mxu0 0
        %1468 = vmatprep.subr.bf16.mxu0 0
        %1469 = vmatpush1.bf16.msra.mxu0 0
        %1470 = vmatprep.subr.bf16.mxu0 0
        %1471 = vmatpush1.bf16.msra.mxu0 0
        %1472 = vmatprep.subr.bf16.mxu0 0
        %1473 = vmatpush1.bf16.msra.mxu0 0
        %1474 = vmatprep.subr.bf16.mxu0 0
        %1475 = vmatpush1.bf16.msra.mxu0 0
        %1476 = vmatprep.subr.bf16.mxu0 0
        %1477 = vmatpush1.bf16.msra.mxu0 0
        %1478 = vmatprep.subr.bf16.mxu0 0
        %1479 = vmatpush1.bf16.msra.mxu0 0
        %1480 = vmatprep.subr.bf16.mxu0 0
        %1481 = vmatpush1.bf16.msra.mxu0 0
        %1482 = vmatprep.subr.bf16.mxu0 0
        %1483 = vmatpush1.bf16.msra.mxu0 0
        %1484 = vmatprep.mubr.bf16.mxu0 0
        %1485 = vmatmul.mubr.bf16.gmra.mrb[0].mxu0 %v1447
        %v1486 = vpop.f32.mrb[0].mxu0
        %v1487 = vadd.f32 0.0, %v1486
        %v1488 = vpop.f32.mrb[0].mxu0
        %v1489 = vpop.f32.mrb[0].mxu0
        %v1490 = vpop.f32.mrb[0].mxu0
        %1491 = vdwg.mxu0
        %v1492 = vpack.c.bf16 %v1487, %v1441
        %v1493 = vld [vmem:[%s938] sm:$0xf]
        %v1495 = vsel %vm1280, %v1492, 0
        %v1498 = vsel %vm1402, %v1493, 0
        %1500 = vmatprep.subr.bf16.mxu0 0
        %1501 = vmatpush1.bf16.msra.mxu0 %v1498
        %1502 = vmatprep.subr.bf16.mxu0 0
        %1503 = vmatpush1.bf16.msra.mxu0 0
        %1504 = vmatprep.subr.bf16.mxu0 0
        %1505 = vmatpush1.bf16.msra.mxu0 0
        %1506 = vmatprep.subr.bf16.mxu0 0
        %1507 = vmatpush1.bf16.msra.mxu0 0
        %1508 = vmatprep.subr.bf16.mxu0 0
        %1509 = vmatpush1.bf16.msra.mxu0 0
        %1510 = vmatprep.subr.bf16.mxu0 0
        %1511 = vmatpush1.bf16.msra.mxu0 0
        %1512 = vmatprep.subr.bf16.mxu0 0
        %1513 = vmatpush1.bf16.msra.mxu0 0
        %1514 = vmatprep.subr.bf16.mxu0 0
        %1515 = vmatpush1.bf16.msra.mxu0 0
        %1516 = vmatprep.subr.bf16.mxu0 0
        %1517 = vmatpush1.bf16.msra.mxu0 0
        %1518 = vmatprep.subr.bf16.mxu0 0
        %1519 = vmatpush1.bf16.msra.mxu0 0
        %1520 = vmatprep.subr.bf16.mxu0 0
        %1521 = vmatpush1.bf16.msra.mxu0 0
        %1522 = vmatprep.subr.bf16.mxu0 0
        %1523 = vmatpush1.bf16.msra.mxu0 0
        %1524 = vmatprep.subr.bf16.mxu0 0
        %1525 = vmatpush1.bf16.msra.mxu0 0
        %1526 = vmatprep.subr.bf16.mxu0 0
        %1527 = vmatpush1.bf16.msra.mxu0 0
        %1528 = vmatprep.subr.bf16.mxu0 0
        %1529 = vmatpush1.bf16.msra.mxu0 0
        %1530 = vmatprep.subr.bf16.mxu0 0
        %1531 = vmatpush1.bf16.msra.mxu0 0
        %1532 = vmatprep.mubr.bf16.mxu0 0
        %1533 = vmatmul.mubr.bf16.gmra.mrb[0].mxu0 %v1495
        %v1534 = vpop.f32.mrb[0].mxu0
        %v1535 = vadd.f32 0.0, %v1534
        %v1536 = vpop.f32.mrb[0].mxu0
        %v1537 = vpop.f32.mrb[0].mxu0
        %v1538 = vadd.f32 0.0, %v1537
        %v1539 = vpop.f32.mrb[0].mxu0
        %1540 = vdwg.mxu0
        %p1541 = scmp.lt.s32.totalorder %s38, 3
        // Predicated region
        $region143: #{tpu_custom_call.1} parent=99 // pred_check
          %p1542 = pneg %p1541
        $region144: #{tpu_custom_call.1} parent=99 // pred_check_branch
          %1544 = sbr.rel (%p1542) target = $region146
        $region145: #{tpu_custom_call.1} parent=99 // pred_region
          %v1545 = vld [vmem:[#allocation2] sm:$0xff]
          %v1546 = vld [vmem:[#allocation2 + $0x8] sm:$0xff]
          %v1547 = vadd.f32 %v1545, %v1535
          %v1548 = vadd.f32 %v1546, %v1538
          %1549 = vst.msk [vmem:[#allocation2] sm:$0xff] %vm1097, %v1547
          %1550 = vst.msk [vmem:[#allocation2 + $0x8] sm:$0xff] %vm1097, %v1548
        $region146: #{tpu_custom_call.1} parent=99 // pred_fallthru
          _
        %p1551 = scmp.eq.s32.totalorder %s38, 3
        // Predicated region
        $region147: #{tpu_custom_call.1} parent=99 // pred_check
          %p1552 = pneg %p1551
        $region148: #{tpu_custom_call.1} parent=99 // pred_check_branch
          %1554 = sbr.rel (%p1552) target = $region150
        $region149: #{tpu_custom_call.1} parent=99 // pred_region
          %v1555 = vld [vmem:[#allocation2] sm:$0xff]
          %v1556 = vld [vmem:[#allocation2 + $0x8] sm:$0xff]
          %v1557 = vadd.f32 %v1555, %v1535
          %v1558 = vadd.f32 %v1556, %v1538
          %v1559 = vld [vmem:[%s941] sm:$0x1]
          %v1561 = vlaneseq
          %v1562 = vshrl.u32 %v1561, 7
          %v1563 = vsub.s32 0, %v1562
          %v1564 = vrot.slane %v1559, %v1563
          %v1566 = vadd.f32 %v1557, %v1564
          %v1567 = vadd.f32 %v1558, %v1564
          %v1568 = vld [vmem:[%s944] sm:$0x1]
          %v1569 = vld [vmem:[%s947] sm:$0x1]
          %v1570 = vsel %vm1097, %v1566, 0.0
          %1571 = vadd.xlane.f32.xlu0 %v1570
          %v1572 = vpop.xlane.xlu0 %1571
          %v1573 = vsel %vm1097, %v1567, 0.0
          %1574 = vadd.xlane.f32.xlu0 %v1573
          %v1575 = vpop.xlane.xlu0 %1574
          %v1576 = vrcp.pop 32.0
          %v1577 = vmul.f32 %v1572, %v1576
          %v1578 = vmul.f32 %v1575, %v1576
          %v1579 = vsub.f32 %v1566, %v1577
          %v1580 = vsub.f32 %v1567, %v1578
          %v1581 = vmul.f32 %v1579, %v1579
          %v1582 = vmul.f32 %v1580, %v1580
          %v1583 = vsel %vm1097, %v1581, 0.0
          %1584 = vadd.xlane.f32.xlu0 %v1583
          %v1585 = vpop.xlane.xlu0 %1584
          %v1586 = vsel %vm1097, %v1582, 0.0
          %1587 = vadd.xlane.f32.xlu0 %v1586
          %v1588 = vpop.xlane.xlu0 %1587
          %v1589 = vmul.f32 %v1585, %v1576
          %v1590 = vmul.f32 %v1588, %v1576
          %v1591 = vadd.f32 %v1589, 1e-05
          %v1592 = vadd.f32 %v1590, 1e-05
          %v1593 = vrsqrt.pop %v1591
          %v1594 = vrsqrt.pop %v1592
          %v1595 = vmul.f32 %v1579, %v1593
          %v1596 = vmul.f32 %v1580, %v1594
          %v1598 = vlaneseq
          %v1599 = vshrl.u32 %v1598, 7
          %v1600 = vsub.s32 0, %v1599
          %v1601 = vrot.slane %v1568, %v1600
          %v1603 = vmul.f32 %v1595, %v1601
          %v1604 = vmul.f32 %v1596, %v1601
          %v1606 = vlaneseq
          %v1607 = vshrl.u32 %v1606, 7
          %v1608 = vsub.s32 0, %v1607
          %v1609 = vrot.slane %v1569, %v1608
          %v1611 = vadd.f32 %v1603, %v1609
          %v1612 = vadd.f32 %v1604, %v1609
          %v1613 = vpack.c.bf16 %v1612, %v1611
          %v1614 = vld [vmem:[%s952] sm:$0xf]
          %v1615 = vld [vmem:[%s952 + $0x4] sm:$0xf]
          %v1616 = vld [vmem:[%s952 + $0x8] sm:$0xf]
          %v1617 = vld [vmem:[%s952 + $0xc] sm:$0xf]
          %v1618 = vld [vmem:[%s955] sm:$0x1]
          %v1620 = vlaneseq
          %v1621 = vshrl.u32 %v1620, 7
          %v1622 = vsub.s32 0, %v1621
          %v1623 = vrot.slane %v1618, %v1622
          %v1629 = vunpack.c.l.b16 %v1614
          %v1630 = vunpack.c.l.b16 %v1615
          %v1631 = vunpack.c.l.b16 %v1616
          %v1632 = vunpack.c.l.b16 %v1617
          %v1633 = vpack.c.b16 %v1630, %v1629
          %v1634 = vpack.c.b16 %v1632, %v1631
          %v1638 = vsel %vm1097, %v1613, 0
          %1640 = vmatprep.subr.bf16.mxu0 0
          %1641 = vmatpush1.bf16.msra.mxu0 %v1633
          %1642 = vmatprep.subr.bf16.mxu0 0
          %1643 = vmatpush1.bf16.msra.mxu0 %v1634
          %1644 = vmatprep.subr.bf16.mxu0 0
          %1645 = vmatpush1.bf16.msra.mxu0 0
          %1646 = vmatprep.subr.bf16.mxu0 0
          %1647 = vmatpush1.bf16.msra.mxu0 0
          %1648 = vmatprep.subr.bf16.mxu0 0
          %1649 = vmatpush1.bf16.msra.mxu0 0
          %1650 = vmatprep.subr.bf16.mxu0 0
          %1651 = vmatpush1.bf16.msra.mxu0 0
          %1652 = vmatprep.subr.bf16.mxu0 0
          %1653 = vmatpush1.bf16.msra.mxu0 0
          %1654 = vmatprep.subr.bf16.mxu0 0
          %1655 = vmatpush1.bf16.msra.mxu0 0
          %1656 = vmatprep.subr.bf16.mxu0 0
          %1657 = vmatpush1.bf16.msra.mxu0 0
          %1658 = vmatprep.subr.bf16.mxu0 0
          %1659 = vmatpush1.bf16.msra.mxu0 0
          %1660 = vmatprep.subr.bf16.mxu0 0
          %1661 = vmatpush1.bf16.msra.mxu0 0
          %1662 = vmatprep.subr.bf16.mxu0 0
          %1663 = vmatpush1.bf16.msra.mxu0 0
          %1664 = vmatprep.subr.bf16.mxu0 0
          %1665 = vmatpush1.bf16.msra.mxu0 0
          %1666 = vmatprep.subr.bf16.mxu0 0
          %1667 = vmatpush1.bf16.msra.mxu0 0
          %1668 = vmatprep.subr.bf16.mxu0 0
          %1669 = vmatpush1.bf16.msra.mxu0 0
          %1670 = vmatprep.subr.bf16.mxu0 0
          %1671 = vmatpush1.bf16.msra.mxu0 0
          %1672 = vmatprep.mubr.bf16.mxu0 0
          %1673 = vmatmul.mubr.bf16.gmra.mrb[0].mxu0 %v1638
          %v1674 = vpop.f32.mrb[0].mxu0
          %v1675 = vadd.f32 %v1623, %v1674
          %v1676 = vpop.f32.mrb[0].mxu0
          %v1677 = vpop.f32.mrb[0].mxu0
          %v1678 = vadd.f32 %v1623, %v1677
          %v1679 = vpop.f32.mrb[0].mxu0
          %1680 = vdwg.mxu0
          %v1681 = vmul.f32 %v1675, 1.702
          %v1682 = vmul.f32 %v1678, 1.702
          %v1683 = vxor.u32 %v1681, 2147483648
          %v1684 = vxor.u32 %v1682, 2147483648
          %v1685 = vmul.f32 %v1683, 1.442695
          %v1686 = vpow.pop %v1685
          %v1687 = vmul.f32 %v1684, 1.442695
          %v1688 = vpow.pop %v1687
          %v1689 = vadd.f32 %v1686, 1.0
          %v1690 = vadd.f32 %v1688, 1.0
          %v1691 = vrcp.pop %v1689
          %v1692 = vmul.f32 1.0, %v1691
          %v1693 = vrcp.pop %v1690
          %v1694 = vmul.f32 1.0, %v1693
          %v1695 = vmul.f32 %v1675, %v1692
          %v1696 = vmul.f32 %v1678, %v1694
          %v1697 = vpack.c.bf16 %v1696, %v1695
          %v1698 = vld [vmem:[%s960] sm:$0xf]
          %v1699 = vld [vmem:[%s960 + $0x4] sm:$0xf]
          %v1700 = vld [vmem:[%s960 + $0x8] sm:$0xf]
          %v1701 = vld [vmem:[%s960 + $0xc] sm:$0xf]
          %v1702 = vld [vmem:[%s960 + $0x10] sm:$0xf]
          %v1703 = vld [vmem:[%s960 + $0x14] sm:$0xf]
          %v1704 = vld [vmem:[%s960 + $0x18] sm:$0xf]
          %v1705 = vld [vmem:[%s960 + $0x1c] sm:$0xf]
          %v1706 = vld [vmem:[%s960 + $0x20] sm:$0xf]
          %v1707 = vld [vmem:[%s960 + $0x24] sm:$0xf]
          %v1708 = vld [vmem:[%s960 + $0x28] sm:$0xf]
          %v1709 = vld [vmem:[%s960 + $0x2c] sm:$0xf]
          %v1710 = vld [vmem:[%s960 + $0x30] sm:$0xf]
          %v1711 = vld [vmem:[%s960 + $0x34] sm:$0xf]
          %v1712 = vld [vmem:[%s960 + $0x38] sm:$0xf]
          %v1713 = vld [vmem:[%s960 + $0x3c] sm:$0xf]
          %v1730 = vunpack.c.l.b16 %v1698
          %v1731 = vunpack.c.l.b16 %v1699
          %v1732 = vunpack.c.l.b16 %v1700
          %v1733 = vunpack.c.l.b16 %v1701
          %v1734 = vunpack.c.l.b16 %v1702
          %v1735 = vunpack.c.l.b16 %v1703
          %v1736 = vunpack.c.l.b16 %v1704
          %v1737 = vunpack.c.l.b16 %v1705
          %v1738 = vunpack.c.l.b16 %v1706
          %v1739 = vunpack.c.l.b16 %v1707
          %v1740 = vunpack.c.l.b16 %v1708
          %v1741 = vunpack.c.l.b16 %v1709
          %v1742 = vunpack.c.l.b16 %v1710
          %v1743 = vunpack.c.l.b16 %v1711
          %v1744 = vunpack.c.l.b16 %v1712
          %v1745 = vunpack.c.l.b16 %v1713
          %v1746 = vpack.c.b16 %v1731, %v1730
          %v1747 = vpack.c.b16 %v1733, %v1732
          %v1748 = vpack.c.b16 %v1735, %v1734
          %v1749 = vpack.c.b16 %v1737, %v1736
          %v1750 = vpack.c.b16 %v1739, %v1738
          %v1751 = vpack.c.b16 %v1741, %v1740
          %v1752 = vpack.c.b16 %v1743, %v1742
          %v1753 = vpack.c.b16 %v1745, %v1744
          %1762 = vmatprep.subr.bf16.mxu0 0
          %1763 = vmatpush1.bf16.msra.mxu0 %v1746
          %1764 = vmatprep.subr.bf16.mxu0 0
          %1765 = vmatpush1.bf16.msra.mxu0 %v1747
          %1766 = vmatprep.subr.bf16.mxu0 0
          %1767 = vmatpush1.bf16.msra.mxu0 %v1748
          %1768 = vmatprep.subr.bf16.mxu0 0
          %1769 = vmatpush1.bf16.msra.mxu0 %v1749
          %1770 = vmatprep.subr.bf16.mxu0 0
          %1771 = vmatpush1.bf16.msra.mxu0 %v1750
          %1772 = vmatprep.subr.bf16.mxu0 0
          %1773 = vmatpush1.bf16.msra.mxu0 %v1751
          %1774 = vmatprep.subr.bf16.mxu0 0
          %1775 = vmatpush1.bf16.msra.mxu0 %v1752
          %1776 = vmatprep.subr.bf16.mxu0 0
          %1777 = vmatpush1.bf16.msra.mxu0 %v1753
          %1778 = vmatprep.subr.bf16.mxu0 0
          %1779 = vmatpush1.bf16.msra.mxu0 0
          %1780 = vmatprep.subr.bf16.mxu0 0
          %1781 = vmatpush1.bf16.msra.mxu0 0
          %1782 = vmatprep.subr.bf16.mxu0 0
          %1783 = vmatpush1.bf16.msra.mxu0 0
          %1784 = vmatprep.subr.bf16.mxu0 0
          %1785 = vmatpush1.bf16.msra.mxu0 0
          %1786 = vmatprep.subr.bf16.mxu0 0
          %1787 = vmatpush1.bf16.msra.mxu0 0
          %1788 = vmatprep.subr.bf16.mxu0 0
          %1789 = vmatpush1.bf16.msra.mxu0 0
          %1790 = vmatprep.subr.bf16.mxu0 0
          %1791 = vmatpush1.bf16.msra.mxu0 0
          %1792 = vmatprep.subr.bf16.mxu0 0
          %1793 = vmatpush1.bf16.msra.mxu0 0
          %1794 = vmatprep.mubr.bf16.mxu0 0
          %1795 = vmatmul.mubr.bf16.gmra.mrb[0].mxu0 %v1697
          %v1796 = vpop.f32.mrb[0].mxu0
          %v1797 = vadd.f32 0.0, %v1796
          %v1798 = vpop.f32.mrb[0].mxu0
          %v1799 = vpop.f32.mrb[0].mxu0
          %v1800 = vadd.f32 0.0, %v1799
          %v1801 = vpop.f32.mrb[0].mxu0
          %1802 = vdwg.mxu0
          %v1803 = vadd.f32 %v1566, %v1797
          %v1804 = vadd.f32 %v1567, %v1800
          %v1805 = vld [vmem:[%s963] sm:$0x1]
          %v1807 = vlaneseq
          %v1808 = vshrl.u32 %v1807, 7
          %v1809 = vsub.s32 0, %v1808
          %v1810 = vrot.slane %v1805, %v1809
          %v1812 = vadd.f32 %v1803, %v1810
          %v1813 = vadd.f32 %v1804, %v1810
          %1814 = vst.msk [vmem:[#allocation2] sm:$0xff] %vm1097, %v1812
          %1815 = vst.msk [vmem:[#allocation2 + $0x8] sm:$0xff] %vm1097, %v1813
        $region150: #{tpu_custom_call.1} parent=99 // pred_fallthru
          _
        %p1816 = scmp.eq.s32.totalorder %s37, 1
        %p1817 = pnand %p1551, %p1816
        %p1818 = pneg %p1817
        // Predicated region
        $region151: #{tpu_custom_call.1} parent=99 // pred_check
          _
        $region152: #{tpu_custom_call.1} parent=99 // pred_check_branch
          %1820 = sbr.rel (%p1817) target = $region154
        $region153: #{tpu_custom_call.1} parent=99 // pred_region
          %v1821 = vld [vmem:[%s1] sm:$0x3]
          %v1822 = vld [vmem:[#allocation2] sm:$0xff]
          %v1823 = vld [vmem:[#allocation2 + $0x8] sm:$0xff]
          %vm1824 = vcmask 130048
          %v1826 = vsel %vm1824, %v1821, 0
          %1828 = vmatprep.subr.mxu0 0.0
          %1829 = vmatpush1.msra.mxu0 %v1822
          %1830 = vmatprep.subr.mxu0 0.0
          %1831 = vmatpush1.msra.mxu0 %v1823
          %1832 = vmatprep.subr.mxu0 0.0
          %1833 = vmatpush1.msra.mxu0 0.0
          %1834 = vmatprep.subr.mxu0 0.0
          %1835 = vmatpush1.msra.mxu0 0.0
          %1836 = vmatprep.subr.mxu0 0.0
          %1837 = vmatpush1.msra.mxu0 0.0
          %1838 = vmatprep.subr.mxu0 0.0
          %1839 = vmatpush1.msra.mxu0 0.0
          %1840 = vmatprep.subr.mxu0 0.0
          %1841 = vmatpush1.msra.mxu0 0.0
          %1842 = vmatprep.subr.mxu0 0.0
          %1843 = vmatpush1.msra.mxu0 0.0
          %1844 = vmatprep.subr.mxu0 0.0
          %1845 = vmatpush1.msra.mxu0 0.0
          %1846 = vmatprep.subr.mxu0 0.0
          %1847 = vmatpush1.msra.mxu0 0.0
          %1848 = vmatprep.subr.mxu0 0.0
          %1849 = vmatpush1.msra.mxu0 0.0
          %1850 = vmatprep.subr.mxu0 0.0
          %1851 = vmatpush1.msra.mxu0 0.0
          %1852 = vmatprep.subr.mxu0 0.0
          %1853 = vmatpush1.msra.mxu0 0.0
          %1854 = vmatprep.subr.mxu0 0.0
          %1855 = vmatpush1.msra.mxu0 0.0
          %1856 = vmatprep.subr.mxu0 0.0
          %1857 = vmatpush1.msra.mxu0 0.0
          %1858 = vmatprep.subr.mxu0 0.0
          %1859 = vmatpush1.msra.mxu0 0.0
          %1860 = vmatprep.subr.mxu0 0.0
          %1861 = vmatpush1.msra.mxu0 0.0
          %1862 = vmatprep.subr.mxu0 0.0
          %1863 = vmatpush1.msra.mxu0 0.0
          %1864 = vmatprep.subr.mxu0 0.0
          %1865 = vmatpush1.msra.mxu0 0.0
          %1866 = vmatprep.subr.mxu0 0.0
          %1867 = vmatpush1.msra.mxu0 0.0
          %1868 = vmatprep.subr.mxu0 0.0
          %1869 = vmatpush1.msra.mxu0 0.0
          %1870 = vmatprep.subr.mxu0 0.0
          %1871 = vmatpush1.msra.mxu0 0.0
          %1872 = vmatprep.subr.mxu0 0.0
          %1873 = vmatpush1.msra.mxu0 0.0
          %1874 = vmatprep.subr.mxu0 0.0
          %1875 = vmatpush1.msra.mxu0 0.0
          %1876 = vmatprep.subr.mxu0 0.0
          %1877 = vmatpush1.msra.mxu0 0.0
          %1878 = vmatprep.subr.mxu0 0.0
          %1879 = vmatpush1.msra.mxu0 0.0
          %1880 = vmatprep.subr.mxu0 0.0
          %1881 = vmatpush1.msra.mxu0 0.0
          %1882 = vmatprep.subr.mxu0 0.0
          %1883 = vmatpush1.msra.mxu0 0.0
          %1884 = vmatprep.subr.mxu0 0.0
          %1885 = vmatpush1.msra.mxu0 0.0
          %1886 = vmatprep.subr.mxu0 0.0
          %1887 = vmatpush1.msra.mxu0 0.0
          %1888 = vmatprep.subr.mxu0 0.0
          %1889 = vmatpush1.msra.mxu0 0.0
          %1890 = vmatprep.subr.mxu0 0.0
          %1891 = vmatpush1.msra.mxu0 0.0
          %1892 = vmatprep.mubr.f32.mxu0 0.0
          %1893 = vmatmul.mubr.f32.gmra.mrb[0].mxu0 %v1826
          %v1894 = vpop.f32.mrb[0].mxu0
          %v1895 = vadd.f32 0.0, %v1894
          %v1896 = vpop.f32.mrb[0].mxu0
          %1897 = vdwg.mxu0
          %v1898 = vld [vmem:[%s18] sm:$0x1]
          %v1899 = vld [vmem:[%s19] sm:$0x1]
          %vm1900 = vcmask 254976
          %v1901 = vsel %vm1900, %v1895, 0.0
          %1902 = vadd.xlane.f32.xlu0 %v1901
          %v1903 = vpop.xlane.xlu0 %1902
          %v1904 = vrcp.pop 32.0
          %v1905 = vmul.f32 %v1903, %v1904
          %v1906 = vsub.f32 %v1895, %v1905
          %v1907 = vmul.f32 %v1906, %v1906
          %v1908 = vsel %vm1900, %v1907, 0.0
          %1909 = vadd.xlane.f32.xlu0 %v1908
          %v1910 = vpop.xlane.xlu0 %1909
          %v1911 = vmul.f32 %v1910, %v1904
          %v1912 = vadd.f32 %v1911, 1e-05
          %v1913 = vrsqrt.pop %v1912
          %v1914 = vmul.f32 %v1906, %v1913
          %v1916 = vlaneseq
          %v1917 = vshrl.u32 %v1916, 7
          %v1918 = vsub.s32 0, %v1917
          %v1919 = vrot.slane %v1898, %v1918
          %v1921 = vmul.f32 %v1914, %v1919
          %v1923 = vlaneseq
          %v1924 = vshrl.u32 %v1923, 7
          %v1925 = vsub.s32 0, %v1924
          %v1926 = vrot.slane %v1899, %v1925
          %v1928 = vadd.f32 %v1921, %v1926
          %v1929 = vld [vmem:[%s20] sm:$0xff]
          %v1930 = vld [vmem:[%s20 + $0x8] sm:$0xff]
          %v1931 = vld [vmem:[%s20 + $0x10] sm:$0xff]
          %v1932 = vld [vmem:[%s20 + $0x18] sm:$0xff]
          %v1934 = vsel %vm1097, %v1928, 0
          %1936 = vmatprep.subr.mxu0 0.0
          %1937 = vmatpush1.msra.mxu0 %v1929
          %1938 = vmatprep.subr.mxu0 0.0
          %1939 = vmatpush1.msra.mxu0 %v1930
          %1940 = vmatprep.subr.mxu0 0.0
          %1941 = vmatpush1.msra.mxu0 %v1931
          %1942 = vmatprep.subr.mxu0 0.0
          %1943 = vmatpush1.msra.mxu0 %v1932
          %1944 = vmatprep.subr.mxu0 0.0
          %1945 = vmatpush1.msra.mxu0 0.0
          %1946 = vmatprep.subr.mxu0 0.0
          %1947 = vmatpush1.msra.mxu0 0.0
          %1948 = vmatprep.subr.mxu0 0.0
          %1949 = vmatpush1.msra.mxu0 0.0
          %1950 = vmatprep.subr.mxu0 0.0
          %1951 = vmatpush1.msra.mxu0 0.0
          %1952 = vmatprep.subr.mxu0 0.0
          %1953 = vmatpush1.msra.mxu0 0.0
          %1954 = vmatprep.subr.mxu0 0.0
          %1955 = vmatpush1.msra.mxu0 0.0
          %1956 = vmatprep.subr.mxu0 0.0
          %1957 = vmatpush1.msra.mxu0 0.0
          %1958 = vmatprep.subr.mxu0 0.0
          %1959 = vmatpush1.msra.mxu0 0.0
          %1960 = vmatprep.subr.mxu0 0.0
          %1961 = vmatpush1.msra.mxu0 0.0
          %1962 = vmatprep.subr.mxu0 0.0
          %1963 = vmatpush1.msra.mxu0 0.0
          %1964 = vmatprep.subr.mxu0 0.0
          %1965 = vmatpush1.msra.mxu0 0.0
          %1966 = vmatprep.subr.mxu0 0.0
          %1967 = vmatpush1.msra.mxu0 0.0
          %1968 = vmatprep.subr.mxu0 0.0
          %1969 = vmatpush1.msra.mxu0 0.0
          %1970 = vmatprep.subr.mxu0 0.0
          %1971 = vmatpush1.msra.mxu0 0.0
          %1972 = vmatprep.subr.mxu0 0.0
          %1973 = vmatpush1.msra.mxu0 0.0
          %1974 = vmatprep.subr.mxu0 0.0
          %1975 = vmatpush1.msra.mxu0 0.0
          %1976 = vmatprep.subr.mxu0 0.0
          %1977 = vmatpush1.msra.mxu0 0.0
          %1978 = vmatprep.subr.mxu0 0.0
          %1979 = vmatpush1.msra.mxu0 0.0
          %1980 = vmatprep.subr.mxu0 0.0
          %1981 = vmatpush1.msra.mxu0 0.0
          %1982 = vmatprep.subr.mxu0 0.0
          %1983 = vmatpush1.msra.mxu0 0.0
          %1984 = vmatprep.subr.mxu0 0.0
          %1985 = vmatpush1.msra.mxu0 0.0
          %1986 = vmatprep.subr.mxu0 0.0
          %1987 = vmatpush1.msra.mxu0 0.0
          %1988 = vmatprep.subr.mxu0 0.0
          %1989 = vmatpush1.msra.mxu0 0.0
          %1990 = vmatprep.subr.mxu0 0.0
          %1991 = vmatpush1.msra.mxu0 0.0
          %1992 = vmatprep.subr.mxu0 0.0
          %1993 = vmatpush1.msra.mxu0 0.0
          %1994 = vmatprep.subr.mxu0 0.0
          %1995 = vmatpush1.msra.mxu0 0.0
          %1996 = vmatprep.subr.mxu0 0.0
          %1997 = vmatpush1.msra.mxu0 0.0
          %1998 = vmatprep.subr.mxu0 0.0
          %1999 = vmatpush1.msra.mxu0 0.0
          %2000 = vmatprep.mubr.f32.mxu0 0.0
          %2001 = vmatmul.mubr.f32.gmra.mrb[0].mxu0 %v1934
          %v2002 = vpop.f32.mrb[0].mxu0
          %v2003 = vadd.f32 0.0, %v2002
          %v2004 = vpop.f32.mrb[0].mxu0
          %2005 = vdwg.mxu0
          %vm2006 = vcmask 123904
          %2007 = vst.msk [vmem:[#allocation5] sm:$0x3] %vm2006, %v2003
        $region154: #{tpu_custom_call.1} parent=99 // pred_fallthru
          _
        // Predicated region
        $region155: #{tpu_custom_call.1} parent=99 // pred_check
          %p2008 = pneg %p572
        $region156: #{tpu_custom_call.1} parent=99 // pred_check_branch
          %2010 = sbr.rel (%p2008) target = $region158
        $region157: #{tpu_custom_call.1} parent=99 // pred_region
          %s2012 = ssub.s32 32, 32
          %2013 = vsyncadd [#allocation6], %s2012
          %s2015 = sshll.u32 [#allocation5], 4
          %s2016 = int_to_ptr.vmem [resolvable:$true] %s2015
          %2018 = dma.vmem_to_hbm [thread:$0]  %s2016, 32, %s21, [#allocation6]
        $region158: #{tpu_custom_call.1} parent=99 // pred_fallthru
          _
        // Predicated region
        $region159: #{tpu_custom_call.1} parent=99 // pred_check
          %p2019 = pneg %p572
        $region160: #{tpu_custom_call.1} parent=99 // pred_check_branch
          %2021 = sbr.rel (%p2019) target = $region162
        $region161: #{tpu_custom_call.1} parent=99 // pred_region
          %2022 = dma.done [#allocation6], 32
        $region162: #{tpu_custom_call.1} parent=99 // pred_fallthru
          _
      $region100: #{tpu_custom_call.1} parent=5 // pred_fallthru
        _
      %p2023 = scmp.le.s32.totalorder 2, %s28
      // Predicated region
      $region163: #{tpu_custom_call.1} parent=5 // pred_check
        %p2024 = pneg %p2023
      $region164: #{tpu_custom_call.1} parent=5 // pred_check_branch
        %2026 = sbr.rel (%p2024) target = $region166
      $region165: #{tpu_custom_call.1} parent=5 // pred_region
        %s2027 = ssub.s32 %s28, 2
      $region166: #{tpu_custom_call.1} parent=5 // pred_fallthru
        _
    $region6: #{tpu_custom_call.1} parent=1 // loop_footer
      %s32 = sadd.s32 1, %s28
    $region7: #{tpu_custom_call.1} parent=1 // loop_footer_branch
      %27 = sbr.rel target = $region3
    $region8: #{tpu_custom_call.1} parent=1 // loop_exit
      _
    %2028 = vsyncpa [#allocation6], 1
    %s2029 = scalar_lea.sflag [#allocation6], 1
    %2030 = vsyncpa %s2029, 1
  %2031 = vsyncmov [#allocation4]
  %s2032 = vpop.sfrf %2031
  %p2033 = scmp.eq.s32.totalorder %s2032, 0
  %p2034 = pneg %p2033
  %2036 = shalt.err (%p2034)

</llo_original>
